<compile_context>
chip_gen: v5e
topology: v5e:2x2
jax: 0.10.0
libtpu: 0.0.40
codegen_flags: <defaults>
</compile_context>

<pallas_src>
import functools

import jax
import jax.numpy as jnp
from jax.experimental import pallas as pl
from jax.experimental.pallas import tpu as pltpu


# ----------------------------- Fused kernel ----------------------------------
def _cross_attn_kernel(q_ref, kv_ref,
                       wq_ref, bq_ref,
                       wkv_ref, bkv_ref,
                       wp_ref, bp_ref,
                       o_ref, *, num_heads):
    # Per-batch block:
    #   q_ref  : (1, L, C)     kv_ref : (1, N, C)
    #   wq_ref : (C, C)        bq_ref : (1, C)      (scale pre-folded into both)
    #   wkv_ref: (C, 2C)       bkv_ref: (1, 2C)
    #   wp_ref : (C, C)        bp_ref : (1, C)
    #   o_ref  : (1, L, C)
    L, C = q_ref.shape[1], q_ref.shape[2]
    D = C // num_heads

    x_q = q_ref[0]    # (L, C)
    x_kv = kv_ref[0]  # (N, C)

    # --- Full-width projections: two MXU matmuls, biases added once. ---------
    # Softmax scale is already folded into wq/bq at weight-prep time.
    q = jnp.dot(x_q, wq_ref[...], preferred_element_type=jnp.float32) + bq_ref[...]      # (L, C)
    kv = jnp.dot(x_kv, wkv_ref[...], preferred_element_type=jnp.float32) + bkv_ref[...]  # (N, 2C)

    # --- Head split: pure data movement (static lane slices -> head stacks). -
    qh = jnp.stack([q[:, h * D:(h + 1) * D] for h in range(num_heads)], axis=0)           # (H, L, D)
    kh = jnp.stack([kv[:, h * D:(h + 1) * D] for h in range(num_heads)], axis=0)          # (H, N, D)
    vh = jnp.stack([kv[:, C + h * D:C + (h + 1) * D] for h in range(num_heads)], axis=0)  # (H, N, D)

    # --- Attention core, batched over heads (f32 throughout). ----------------
    s = jnp.einsum("hld,hnd->hln", qh, kh,
                   preferred_element_type=jnp.float32)              # (H, L, N), already scaled
    m = jnp.max(s, axis=-1, keepdims=True)
    e = jnp.exp(s - m)
    p = e / jnp.sum(e, axis=-1, keepdims=True)                      # exact softmax
    o = jnp.einsum("hln,hnd->hld", p, vh,
                   preferred_element_type=jnp.float32)              # (H, L, D)

    # --- Head merge + single output projection. ------------------------------
    x = jnp.concatenate([o[h] for h in range(num_heads)], axis=-1)  # (L, C), head-major columns
    out = jnp.dot(x, wp_ref[...], preferred_element_type=jnp.float32) + bp_ref[...]
    o_ref[0] = out.astype(o_ref.dtype)


# ------------------------- One-time weight prep -------------------------------
def prepare_params(params, num_heads):
    """Done ONCE at weight-load time (outside the jitted forward).

    Keeps all weights 2-D; only reshapes biases to (1, C_out) and folds the
    softmax scale into the q projection.
    """
    C = params["wq"].shape[0]
    D = C // num_heads
    scale = D ** (-0.5)
    return {
        "wq": params["wq"] * scale,                    # (C, C)   scale folded in
        "bq": (params["bq"] * scale).reshape(1, C),    # (1, C)
        "wkv": params["wkv"],                          # (C, 2C)
        "bkv": params["bkv"].reshape(1, 2 * C),        # (1, 2C)
        "wproj": params["wproj"],                      # (C, C)
        "bproj": params["bproj"].reshape(1, C),        # (1, C)
    }


# ----------------------------- Forward wrapper --------------------------------
@functools.partial(jax.jit, static_argnames=("num_heads",))
def cross_attention_forward(q_in, kv_in, prepped, *, num_heads):
    B, N, C = kv_in.shape
    _, L, _ = q_in.shape

    kern = functools.partial(_cross_attn_kernel, num_heads=num_heads)
    return pl.pallas_call(
        kern,
        out_shape=jax.ShapeDtypeStruct((B, L, C), q_in.dtype),
        grid=(B,),
        in_specs=[
            pl.BlockSpec((1, L, C), lambda b: (b, 0, 0)),    # q_in  (per-batch)
            pl.BlockSpec((1, N, C), lambda b: (b, 0, 0)),    # kv_in (per-batch)
            pl.BlockSpec((C, C), lambda b: (0, 0)),          # wq (scaled)
            pl.BlockSpec((1, C), lambda b: (0, 0)),          # bq (scaled)
            pl.BlockSpec((C, 2 * C), lambda b: (0, 0)),      # wkv
            pl.BlockSpec((1, 2 * C), lambda b: (0, 0)),      # bkv
            pl.BlockSpec((C, C), lambda b: (0, 0)),          # wproj
            pl.BlockSpec((1, C), lambda b: (0, 0)),          # bproj
        ],
        out_specs=pl.BlockSpec((1, L, C), lambda b: (b, 0, 0)),
        compiler_params=pltpu.CompilerParams(
            dimension_semantics=("parallel",),
        ),
    )(q_in, kv_in,
      prepped["wq"], prepped["bq"],
      prepped["wkv"], prepped["bkv"],
      prepped["wproj"], prepped["bproj"])


# -------------------------- Pure-JAX reference -------------------------------
def cross_attention_ref(q_in, kv_in, params, num_heads):
    B, N, C = kv_in.shape
    _, L, _ = q_in.shape
    D = C // num_heads
    scale = D ** (-0.5)
    q = q_in @ params["wq"] + params["bq"]
    kv = kv_in @ params["wkv"] + params["bkv"]
    kv = jnp.transpose(kv.reshape(B, N, 2, num_heads, D), (2, 0, 3, 1, 4))
    k, v = kv[0], kv[1]
    qh = jnp.transpose(q.reshape(B, L, num_heads, D), (0, 2, 1, 3))
    attn = jnp.einsum("bhld,bhnd->bhln", qh, k) * scale
    attn = jax.nn.softmax(attn, axis=-1)
    x = jnp.einsum("bhln,bhnd->bhld", attn, v)
    x = jnp.transpose(x, (0, 2, 1, 3)).reshape(B, L, C)
    return x @ params["wproj"] + params["bproj"]


# --------------------------------- Main ---------------------------------------
if __name__ == "__main__":
    B, L, N, C, H = 2, 8, 16, 32, 8  # head_dim = 4

    key = jax.random.PRNGKey(0)
    ks = jax.random.split(key, 8)

    # Parameters stored pre-transposed: (C_in, C_out); biases (C_out,)
    params = {
        "wq":    0.1 * jax.random.normal(ks[0], (C, C), jnp.float32),
        "bq":    0.1 * jax.random.normal(ks[1], (C,), jnp.float32),
        "wkv":   0.1 * jax.random.normal(ks[2], (C, 2 * C), jnp.float32),
        "bkv":   0.1 * jax.random.normal(ks[3], (2 * C,), jnp.float32),
        "wproj": 0.1 * jax.random.normal(ks[4], (C, C), jnp.float32),
        "bproj": 0.1 * jax.random.normal(ks[5], (C,), jnp.float32),
    }

    q_in = jax.random.normal(ks[6], (B, L, C), jnp.float32)
    kv_in = jax.random.normal(ks[7], (B, N, C), jnp.float32)

    # Weight prep happens once, outside the jitted forward ("weight-load time").
    prepped = jax.tree_util.tree_map(jax.block_until_ready,
                                     prepare_params(params, H))

    out = cross_attention_forward(q_in, kv_in, prepped, num_heads=H)
    out = jax.block_until_ready(out)

    ref = cross_attention_ref(q_in, kv_in, params, H)
    assert out.shape == (B, L, C)
    assert jnp.allclose(out, ref, atol=1e-4, rtol=1e-4), "mismatch vs reference"

    print("KERNEL_OK")
</pallas_src>

<mosaic_0001>
module attributes {stable_mosaic.version = 11 : i64} {
  func.func @_cross_attn_kernel(%arg0: i32, %arg1: memref<1x8x32xf32, #tpu.memory_space<vmem>>, %arg2: memref<1x16x32xf32, #tpu.memory_space<vmem>>, %arg3: memref<32x32xf32, #tpu.memory_space<vmem>>, %arg4: memref<1x32xf32, #tpu.memory_space<vmem>>, %arg5: memref<32x64xf32, #tpu.memory_space<vmem>>, %arg6: memref<1x64xf32, #tpu.memory_space<vmem>>, %arg7: memref<32x32xf32, #tpu.memory_space<vmem>>, %arg8: memref<1x32xf32, #tpu.memory_space<vmem>>, %arg9: memref<1x8x32xf32, #tpu.memory_space<vmem>>) attributes {dimension_semantics = [#tpu.dimension_semantics<parallel>], iteration_bounds = array<i64: 2>, scalar_prefetch = 0 : i64, scratch_operands = 0 : i64, tpu.core_type = #tpu.core_type<tc>, window_params = [{transform_indices = @transform_0, window_bounds = array<i64: 1, 8, 32>}, {transform_indices = @transform_1, window_bounds = array<i64: 1, 16, 32>}, {pipeline_mode = #tpu.pipeline_mode<synchronous>, transform_indices = @transform_2, window_bounds = array<i64: 32, 32>}, {pipeline_mode = #tpu.pipeline_mode<synchronous>, transform_indices = @transform_3, window_bounds = array<i64: 1, 32>}, {pipeline_mode = #tpu.pipeline_mode<synchronous>, transform_indices = @transform_4, window_bounds = array<i64: 32, 64>}, {pipeline_mode = #tpu.pipeline_mode<synchronous>, transform_indices = @transform_5, window_bounds = array<i64: 1, 64>}, {pipeline_mode = #tpu.pipeline_mode<synchronous>, transform_indices = @transform_6, window_bounds = array<i64: 32, 32>}, {pipeline_mode = #tpu.pipeline_mode<synchronous>, transform_indices = @transform_7, window_bounds = array<i64: 1, 32>}, {transform_indices = @transform_8, window_bounds = array<i64: 1, 8, 32>}]} {
    %c0 = arith.constant 0 : index
    %c0_0 = arith.constant 0 : index
    %c0_1 = arith.constant 0 : index
    %0 = vector.load %arg1[%c0, %c0_0, %c0_1] : memref<1x8x32xf32, #tpu.memory_space<vmem>>, vector<1x8x32xf32>
    %1 = vector.shape_cast %0 : vector<1x8x32xf32> to vector<8x32xf32>
    %c0_2 = arith.constant 0 : index
    %c0_3 = arith.constant 0 : index
    %c0_4 = arith.constant 0 : index
    %2 = vector.load %arg2[%c0_2, %c0_3, %c0_4] : memref<1x16x32xf32, #tpu.memory_space<vmem>>, vector<1x16x32xf32>
    %3 = vector.shape_cast %2 : vector<1x16x32xf32> to vector<16x32xf32>
    %c0_5 = arith.constant 0 : index
    %c0_6 = arith.constant 0 : index
    %4 = vector.load %arg3[%c0_5, %c0_6] : memref<32x32xf32, #tpu.memory_space<vmem>>, vector<32x32xf32>
    %cst = arith.constant dense<0.000000e+00> : vector<8x32xf32>
    %5 = tpu.matmul %1, %4, %cst {dimension_numbers = #tpu.dot_dimension_numbers<[1], [0], [0], [1], [0, 0, 1, 1], [], []>} : vector<8x32xf32>, vector<32x32xf32>, vector<8x32xf32> -> vector<8x32xf32>
    %c0_7 = arith.constant 0 : index
    %c0_8 = arith.constant 0 : index
    %6 = vector.load %arg4[%c0_7, %c0_8] : memref<1x32xf32, #tpu.memory_space<vmem>>, vector<1x32xf32>
    %7 = vector.broadcast %6 : vector<1x32xf32> to vector<8x32xf32>
    %8 = arith.addf %5, %7 : vector<8x32xf32>
    %c0_9 = arith.constant 0 : index
    %c0_10 = arith.constant 0 : index
    %9 = vector.load %arg5[%c0_9, %c0_10] : memref<32x64xf32, #tpu.memory_space<vmem>>, vector<32x64xf32>
    %cst_11 = arith.constant dense<0.000000e+00> : vector<16x64xf32>
    %10 = tpu.matmul %3, %9, %cst_11 {dimension_numbers = #tpu.dot_dimension_numbers<[1], [0], [0], [1], [0, 0, 1, 1], [], []>} : vector<16x32xf32>, vector<32x64xf32>, vector<16x64xf32> -> vector<16x64xf32>
    %c0_12 = arith.constant 0 : index
    %c0_13 = arith.constant 0 : index
    %11 = vector.load %arg6[%c0_12, %c0_13] : memref<1x64xf32, #tpu.memory_space<vmem>>, vector<1x64xf32>
    %12 = vector.broadcast %11 : vector<1x64xf32> to vector<16x64xf32>
    %13 = arith.addf %10, %12 : vector<16x64xf32>
    %14 = vector.extract_strided_slice %8 {offsets = [0, 0], sizes = [8, 4], strides = [1, 1]} : vector<8x32xf32> to vector<8x4xf32>
    %15 = vector.extract_strided_slice %8 {offsets = [0, 4], sizes = [8, 4], strides = [1, 1]} : vector<8x32xf32> to vector<8x4xf32>
    %16 = vector.extract_strided_slice %8 {offsets = [0, 8], sizes = [8, 4], strides = [1, 1]} : vector<8x32xf32> to vector<8x4xf32>
    %17 = vector.extract_strided_slice %8 {offsets = [0, 12], sizes = [8, 4], strides = [1, 1]} : vector<8x32xf32> to vector<8x4xf32>
    %18 = vector.extract_strided_slice %8 {offsets = [0, 16], sizes = [8, 4], strides = [1, 1]} : vector<8x32xf32> to vector<8x4xf32>
    %19 = vector.extract_strided_slice %8 {offsets = [0, 20], sizes = [8, 4], strides = [1, 1]} : vector<8x32xf32> to vector<8x4xf32>
    %20 = vector.extract_strided_slice %8 {offsets = [0, 24], sizes = [8, 4], strides = [1, 1]} : vector<8x32xf32> to vector<8x4xf32>
    %21 = vector.extract_strided_slice %8 {offsets = [0, 28], sizes = [8, 4], strides = [1, 1]} : vector<8x32xf32> to vector<8x4xf32>
    %22 = vector.shape_cast %14 : vector<8x4xf32> to vector<1x8x4xf32>
    %23 = vector.shape_cast %15 : vector<8x4xf32> to vector<1x8x4xf32>
    %24 = vector.shape_cast %16 : vector<8x4xf32> to vector<1x8x4xf32>
    %25 = vector.shape_cast %17 : vector<8x4xf32> to vector<1x8x4xf32>
    %26 = vector.shape_cast %18 : vector<8x4xf32> to vector<1x8x4xf32>
    %27 = vector.shape_cast %19 : vector<8x4xf32> to vector<1x8x4xf32>
    %28 = vector.shape_cast %20 : vector<8x4xf32> to vector<1x8x4xf32>
    %29 = vector.shape_cast %21 : vector<8x4xf32> to vector<1x8x4xf32>
    %30 = tpu.concatenate %22, %23, %24, %25, %26, %27, %28, %29 in 0 : vector<1x8x4xf32>, vector<1x8x4xf32>, vector<1x8x4xf32>, vector<1x8x4xf32>, vector<1x8x4xf32>, vector<1x8x4xf32>, vector<1x8x4xf32>, vector<1x8x4xf32> -> vector<8x8x4xf32>
    %31 = vector.extract_strided_slice %13 {offsets = [0, 0], sizes = [16, 4], strides = [1, 1]} : vector<16x64xf32> to vector<16x4xf32>
    %32 = vector.extract_strided_slice %13 {offsets = [0, 4], sizes = [16, 4], strides = [1, 1]} : vector<16x64xf32> to vector<16x4xf32>
    %33 = vector.extract_strided_slice %13 {offsets = [0, 8], sizes = [16, 4], strides = [1, 1]} : vector<16x64xf32> to vector<16x4xf32>
    %34 = vector.extract_strided_slice %13 {offsets = [0, 12], sizes = [16, 4], strides = [1, 1]} : vector<16x64xf32> to vector<16x4xf32>
    %35 = vector.extract_strided_slice %13 {offsets = [0, 16], sizes = [16, 4], strides = [1, 1]} : vector<16x64xf32> to vector<16x4xf32>
    %36 = vector.extract_strided_slice %13 {offsets = [0, 20], sizes = [16, 4], strides = [1, 1]} : vector<16x64xf32> to vector<16x4xf32>
    %37 = vector.extract_strided_slice %13 {offsets = [0, 24], sizes = [16, 4], strides = [1, 1]} : vector<16x64xf32> to vector<16x4xf32>
    %38 = vector.extract_strided_slice %13 {offsets = [0, 28], sizes = [16, 4], strides = [1, 1]} : vector<16x64xf32> to vector<16x4xf32>
    %39 = vector.shape_cast %31 : vector<16x4xf32> to vector<1x16x4xf32>
    %40 = vector.shape_cast %32 : vector<16x4xf32> to vector<1x16x4xf32>
    %41 = vector.shape_cast %33 : vector<16x4xf32> to vector<1x16x4xf32>
    %42 = vector.shape_cast %34 : vector<16x4xf32> to vector<1x16x4xf32>
    %43 = vector.shape_cast %35 : vector<16x4xf32> to vector<1x16x4xf32>
    %44 = vector.shape_cast %36 : vector<16x4xf32> to vector<1x16x4xf32>
    %45 = vector.shape_cast %37 : vector<16x4xf32> to vector<1x16x4xf32>
    %46 = vector.shape_cast %38 : vector<16x4xf32> to vector<1x16x4xf32>
    %47 = tpu.concatenate %39, %40, %41, %42, %43, %44, %45, %46 in 0 : vector<1x16x4xf32>, vector<1x16x4xf32>, vector<1x16x4xf32>, vector<1x16x4xf32>, vector<1x16x4xf32>, vector<1x16x4xf32>, vector<1x16x4xf32>, vector<1x16x4xf32> -> vector<8x16x4xf32>
    %48 = vector.extract_strided_slice %13 {offsets = [0, 32], sizes = [16, 4], strides = [1, 1]} : vector<16x64xf32> to vector<16x4xf32>
    %49 = vector.extract_strided_slice %13 {offsets = [0, 36], sizes = [16, 4], strides = [1, 1]} : vector<16x64xf32> to vector<16x4xf32>
    %50 = vector.extract_strided_slice %13 {offsets = [0, 40], sizes = [16, 4], strides = [1, 1]} : vector<16x64xf32> to vector<16x4xf32>
    %51 = vector.extract_strided_slice %13 {offsets = [0, 44], sizes = [16, 4], strides = [1, 1]} : vector<16x64xf32> to vector<16x4xf32>
    %52 = vector.extract_strided_slice %13 {offsets = [0, 48], sizes = [16, 4], strides = [1, 1]} : vector<16x64xf32> to vector<16x4xf32>
    %53 = vector.extract_strided_slice %13 {offsets = [0, 52], sizes = [16, 4], strides = [1, 1]} : vector<16x64xf32> to vector<16x4xf32>
    %54 = vector.extract_strided_slice %13 {offsets = [0, 56], sizes = [16, 4], strides = [1, 1]} : vector<16x64xf32> to vector<16x4xf32>
    %55 = vector.extract_strided_slice %13 {offsets = [0, 60], sizes = [16, 4], strides = [1, 1]} : vector<16x64xf32> to vector<16x4xf32>
    %56 = vector.shape_cast %48 : vector<16x4xf32> to vector<1x16x4xf32>
    %57 = vector.shape_cast %49 : vector<16x4xf32> to vector<1x16x4xf32>
    %58 = vector.shape_cast %50 : vector<16x4xf32> to vector<1x16x4xf32>
    %59 = vector.shape_cast %51 : vector<16x4xf32> to vector<1x16x4xf32>
    %60 = vector.shape_cast %52 : vector<16x4xf32> to vector<1x16x4xf32>
    %61 = vector.shape_cast %53 : vector<16x4xf32> to vector<1x16x4xf32>
    %62 = vector.shape_cast %54 : vector<16x4xf32> to vector<1x16x4xf32>
    %63 = vector.shape_cast %55 : vector<16x4xf32> to vector<1x16x4xf32>
    %64 = tpu.concatenate %56, %57, %58, %59, %60, %61, %62, %63 in 0 : vector<1x16x4xf32>, vector<1x16x4xf32>, vector<1x16x4xf32>, vector<1x16x4xf32>, vector<1x16x4xf32>, vector<1x16x4xf32>, vector<1x16x4xf32>, vector<1x16x4xf32> -> vector<8x16x4xf32>
    "tpu.trace_start"() <{level = 10 : i32, message = "hld,hnd->hln"}> : () -> ()
    %cst_14 = arith.constant dense<0.000000e+00> : vector<8x8x16xf32>
    %65 = tpu.matmul %30, %47, %cst_14 {dimension_numbers = #tpu.dot_dimension_numbers<[2], [2], [1], [1], [0, 0, 0, 1, 1, 1], [0], [0]>} : vector<8x8x4xf32>, vector<8x16x4xf32>, vector<8x8x16xf32> -> vector<8x8x16xf32>
    "tpu.trace_stop"() : () -> ()
    %cst_15 = arith.constant dense<0xFF800000> : vector<8x8xf32>
    %66 = vector.multi_reduction <maximumf>, %65, %cst_15 [2] : vector<8x8x16xf32> to vector<8x8xf32>
    %67 = vector.shape_cast %66 : vector<8x8xf32> to vector<8x8x1xf32>
    %68 = vector.broadcast %67 : vector<8x8x1xf32> to vector<8x8x16xf32>
    %69 = arith.subf %65, %68 : vector<8x8x16xf32>
    %70 = math.exp %69 : vector<8x8x16xf32>
    %cst_16 = arith.constant dense<0.000000e+00> : vector<8x8xf32>
    %71 = vector.multi_reduction <add>, %70, %cst_16 [2] : vector<8x8x16xf32> to vector<8x8xf32>
    %72 = vector.shape_cast %71 : vector<8x8xf32> to vector<8x8x1xf32>
    %73 = vector.broadcast %72 : vector<8x8x1xf32> to vector<8x8x16xf32>
    %74 = arith.divf %70, %73 : vector<8x8x16xf32>
    "tpu.trace_start"() <{level = 10 : i32, message = "hln,hnd->hld"}> : () -> ()
    %cst_17 = arith.constant dense<0.000000e+00> : vector<8x8x4xf32>
    %75 = tpu.matmul %74, %64, %cst_17 {dimension_numbers = #tpu.dot_dimension_numbers<[2], [1], [1], [2], [0, 0, 0, 1, 1, 2], [0], [0]>} : vector<8x8x16xf32>, vector<8x16x4xf32>, vector<8x8x4xf32> -> vector<8x8x4xf32>
    "tpu.trace_stop"() : () -> ()
    %76 = vector.extract_strided_slice %75 {offsets = [0, 0, 0], sizes = [1, 8, 4], strides = [1, 1, 1]} : vector<8x8x4xf32> to vector<1x8x4xf32>
    %77 = vector.shape_cast %76 : vector<1x8x4xf32> to vector<8x4xf32>
    %78 = vector.extract_strided_slice %75 {offsets = [1, 0, 0], sizes = [1, 8, 4], strides = [1, 1, 1]} : vector<8x8x4xf32> to vector<1x8x4xf32>
    %79 = vector.shape_cast %78 : vector<1x8x4xf32> to vector<8x4xf32>
    %80 = vector.extract_strided_slice %75 {offsets = [2, 0, 0], sizes = [1, 8, 4], strides = [1, 1, 1]} : vector<8x8x4xf32> to vector<1x8x4xf32>
    %81 = vector.shape_cast %80 : vector<1x8x4xf32> to vector<8x4xf32>
    %82 = vector.extract_strided_slice %75 {offsets = [3, 0, 0], sizes = [1, 8, 4], strides = [1, 1, 1]} : vector<8x8x4xf32> to vector<1x8x4xf32>
    %83 = vector.shape_cast %82 : vector<1x8x4xf32> to vector<8x4xf32>
    %84 = vector.extract_strided_slice %75 {offsets = [4, 0, 0], sizes = [1, 8, 4], strides = [1, 1, 1]} : vector<8x8x4xf32> to vector<1x8x4xf32>
    %85 = vector.shape_cast %84 : vector<1x8x4xf32> to vector<8x4xf32>
    %86 = vector.extract_strided_slice %75 {offsets = [5, 0, 0], sizes = [1, 8, 4], strides = [1, 1, 1]} : vector<8x8x4xf32> to vector<1x8x4xf32>
    %87 = vector.shape_cast %86 : vector<1x8x4xf32> to vector<8x4xf32>
    %88 = vector.extract_strided_slice %75 {offsets = [6, 0, 0], sizes = [1, 8, 4], strides = [1, 1, 1]} : vector<8x8x4xf32> to vector<1x8x4xf32>
    %89 = vector.shape_cast %88 : vector<1x8x4xf32> to vector<8x4xf32>
    %90 = vector.extract_strided_slice %75 {offsets = [7, 0, 0], sizes = [1, 8, 4], strides = [1, 1, 1]} : vector<8x8x4xf32> to vector<1x8x4xf32>
    %91 = vector.shape_cast %90 : vector<1x8x4xf32> to vector<8x4xf32>
    %92 = tpu.concatenate %77, %79, %81, %83, %85, %87, %89, %91 in 1 : vector<8x4xf32>, vector<8x4xf32>, vector<8x4xf32>, vector<8x4xf32>, vector<8x4xf32>, vector<8x4xf32>, vector<8x4xf32>, vector<8x4xf32> -> vector<8x32xf32>
    %c0_18 = arith.constant 0 : index
    %c0_19 = arith.constant 0 : index
    %93 = vector.load %arg7[%c0_18, %c0_19] : memref<32x32xf32, #tpu.memory_space<vmem>>, vector<32x32xf32>
    %cst_20 = arith.constant dense<0.000000e+00> : vector<8x32xf32>
    %94 = tpu.matmul %92, %93, %cst_20 {dimension_numbers = #tpu.dot_dimension_numbers<[1], [0], [0], [1], [0, 0, 1, 1], [], []>} : vector<8x32xf32>, vector<32x32xf32>, vector<8x32xf32> -> vector<8x32xf32>
    %c0_21 = arith.constant 0 : index
    %c0_22 = arith.constant 0 : index
    %95 = vector.load %arg8[%c0_21, %c0_22] : memref<1x32xf32, #tpu.memory_space<vmem>>, vector<1x32xf32>
    %96 = vector.broadcast %95 : vector<1x32xf32> to vector<8x32xf32>
    %97 = arith.addf %94, %96 : vector<8x32xf32>
    %c0_23 = arith.constant 0 : index
    %c0_24 = arith.constant 0 : index
    %c0_25 = arith.constant 0 : index
    %98 = vector.load %arg9[%c0_23, %c0_24, %c0_25] : memref<1x8x32xf32, #tpu.memory_space<vmem>>, vector<1x8x32xf32>
    %99 = vector.shape_cast %98 : vector<1x8x32xf32> to vector<8x32xf32>
    %100 = vector.shape_cast %97 : vector<8x32xf32> to vector<1x8x32xf32>
    tpu.vector_store %arg9[%c0_23, %c0_24, %c0_25], %100 {strides = array<i32>} : memref<1x8x32xf32, #tpu.memory_space<vmem>>, vector<1x8x32xf32>,
    return
  }
  func.func @transform_0(%arg0: i32) -> (i32, i32, i32) {
    %c0_i32 = arith.constant 0 : i32
    %c0_i32_0 = arith.constant 0 : i32
    %c0_i32_1 = arith.constant 0 : i32
    return %arg0, %c0_i32, %c0_i32_0 : i32, i32, i32
  }
  func.func @transform_1(%arg0: i32) -> (i32, i32, i32) {
    %c0_i32 = arith.constant 0 : i32
    %c0_i32_0 = arith.constant 0 : i32
    %c0_i32_1 = arith.constant 0 : i32
    return %arg0, %c0_i32, %c0_i32_0 : i32, i32, i32
  }
  func.func @transform_2(%arg0: i32) -> (i32, i32) {
    %c0_i32 = arith.constant 0 : i32
    %c0_i32_0 = arith.constant 0 : i32
    %c0_i32_1 = arith.constant 0 : i32
    return %c0_i32, %c0_i32_0 : i32, i32
  }
  func.func @transform_3(%arg0: i32) -> (i32, i32) {
    %c0_i32 = arith.constant 0 : i32
    %c0_i32_0 = arith.constant 0 : i32
    %c0_i32_1 = arith.constant 0 : i32
    return %c0_i32, %c0_i32_0 : i32, i32
  }
  func.func @transform_4(%arg0: i32) -> (i32, i32) {
    %c0_i32 = arith.constant 0 : i32
    %c0_i32_0 = arith.constant 0 : i32
    %c0_i32_1 = arith.constant 0 : i32
    return %c0_i32, %c0_i32_0 : i32, i32
  }
  func.func @transform_5(%arg0: i32) -> (i32, i32) {
    %c0_i32 = arith.constant 0 : i32
    %c0_i32_0 = arith.constant 0 : i32
    %c0_i32_1 = arith.constant 0 : i32
    return %c0_i32, %c0_i32_0 : i32, i32
  }
  func.func @transform_6(%arg0: i32) -> (i32, i32) {
    %c0_i32 = arith.constant 0 : i32
    %c0_i32_0 = arith.constant 0 : i32
    %c0_i32_1 = arith.constant 0 : i32
    return %c0_i32, %c0_i32_0 : i32, i32
  }
  func.func @transform_7(%arg0: i32) -> (i32, i32) {
    %c0_i32 = arith.constant 0 : i32
    %c0_i32_0 = arith.constant 0 : i32
    %c0_i32_1 = arith.constant 0 : i32
    return %c0_i32, %c0_i32_0 : i32, i32
  }
  func.func @transform_8(%arg0: i32) -> (i32, i32, i32) {
    %c0_i32 = arith.constant 0 : i32
    %c0_i32_0 = arith.constant 0 : i32
    %c0_i32_1 = arith.constant 0 : i32
    return %arg0, %c0_i32, %c0_i32_0 : i32, i32, i32
  }
}

</mosaic_0001>

<llo_original>
// kernel: cross_attention_forward.1
$region0: #{cross_attention_forward.1}
  #allocation0 [shape = 'u32[]', space=smem, size = 0x4, offset = 0x4, fixed_abs, tag = 'smem constant byte address 0x4 - core index']
  #allocation1 [shape = 'u32[72,128]{1,0:T(1,128)}', space=vmem, size = 0x9000, scoped, tag = 'internal scratch']
  %s0 = inlined_call_operand.hbm [shape: f32[2,8,32], index: 0, kind: input, shape index: {}]
  %s1 = inlined_call_operand.hbm [shape: f32[2,16,32], index: 1, kind: input, shape index: {}]
  %s2 = inlined_call_operand.hbm [shape: f32[32,32], index: 2, kind: input, shape index: {}]
  %s3 = inlined_call_operand.vmem [shape: f32[1,32], index: 3, kind: input, shape index: {}]
  %s4 = inlined_call_operand.hbm [shape: f32[32,64], index: 4, kind: input, shape index: {}]
  %s5 = inlined_call_operand.hbm [shape: f32[1,64], index: 5, kind: input, shape index: {}]
  %s6 = inlined_call_operand.hbm [shape: f32[32,32], index: 6, kind: input, shape index: {}]
  %s7 = inlined_call_operand.vmem [shape: f32[1,32], index: 7, kind: input, shape index: {}]
  %s8 = inlined_call_operand.hbm [shape: f32[2,8,32], index: 8, kind: output, shape index: {}]
  %s9 = sld [smem:[#allocation0]]
  $region89: #{cross_attention_forward.1} parent=0
    _
  %s11 = ssub.s32 1, %s9
  %s12 = scalar_select 0, %s11, %s9
  $region1: #{cross_attention_forward.1} parent=0
    #allocation2 [shape = 'u8[8192]{0}', space=vmem, size = 0x2000, scoped, tag = 'input window, operand 0']
    #allocation3 [shape = 's32[2]{0}', space=sflag, size = 0x8, scoped, tag = 'scoped memory for cross_attention_forward.1']
    #allocation4 [shape = 's32[2]{0}', space=sflag, size = 0x8, scoped, tag = 'scoped memory for cross_attention_forward.1']
    #allocation5 [shape = 'u8[16384]{0}', space=vmem, size = 0x4000, scoped, tag = 'input window, operand 1']
    #allocation6 [shape = 's32[2]{0}', space=sflag, size = 0x8, scoped, tag = 'scoped memory for cross_attention_forward.1']
    #allocation7 [shape = 'u8[16384]{0}', space=vmem, size = 0x4000, scoped, tag = 'input window, operand 2, single buffered']
    #allocation8 [shape = 'u8[16384]{0}', space=vmem, size = 0x4000, scoped, tag = 'input window, operand 4, single buffered']
    #allocation9 [shape = 's32[1]{0}', space=sflag, size = 0x4, scoped, tag = 'scoped memory for cross_attention_forward.1']
    #allocation10 [shape = 'u8[512]{0}', space=vmem, size = 0x400, scoped, tag = 'input window, operand 5, single buffered']
    #allocation11 [shape = 'u8[16384]{0}', space=vmem, size = 0x4000, scoped, tag = 'input window, operand 6, single buffered']
    #allocation12 [shape = 's32[1]{0}', space=sflag, size = 0x4, scoped, tag = 'scoped memory for cross_attention_forward.1']
    #allocation13 [shape = 'u8[8192]{0}', space=vmem, size = 0x2000, scoped, tag = 'output window, operand 0']
    %13 = vsyncpa [#allocation3], 0
    %s14 = scalar_lea.sflag [#allocation3], 1
    %15 = vsyncpa %s14, 0
    %16 = vsyncpa [#allocation6], 0
    %s17 = scalar_lea.sflag [#allocation6], 1
    %18 = vsyncpa %s17, 0
    %19 = vsyncpa [#allocation9], 0
    %20 = vsyncpa [#allocation12], 0
    %21 = vsyncpa [#allocation4], 0
    %s22 = scalar_lea.sflag [#allocation4], 1
    %23 = vsyncpa %s22, 0
    loop: start=0, step=1, limit=4
    $region2: #{cross_attention_forward.1} parent=1 // loop_pre_header
      _
    $region3: #{cross_attention_forward.1} parent=1 // loop_header
      %s25 = sphi 0, %s29
      %p26 = scmp.ge.s32.totalorder %s25, 4
      %s35 = sphi 0, %s37
      %s38 = sphi 0, %s35
      %s39 = sphi 0, %s38
      %s55 = sphi 0, %s39
      %s61 = sphi 0, %s63
      %s64 = sphi 0, %s61
      %s65 = sphi 0, %s64
      %s81 = sphi 0, %s65
      %s85 = sphi 0, %s85
      %s87 = sphi 0, %s85
      %s88 = sphi 0, %s87
      %s102 = sphi 0, %s88
      %s106 = sphi 0, %s106
      %s108 = sphi 0, %s106
      %s109 = sphi 0, %s108
      %s123 = sphi 0, %s109
      %s127 = sphi 0, %s127
      %s129 = sphi 0, %s127
      %s130 = sphi 0, %s129
      %s144 = sphi 0, %s130
      %s148 = sphi 0, %s148
      %s150 = sphi 0, %s148
      %s151 = sphi 0, %s150
      %s165 = sphi 0, %s151
      %s169 = sphi 0, %s169
      %s171 = sphi 0, %s169
      %s172 = sphi 0, %s171
      %s186 = sphi 0, %s172
      %s190 = sphi 0, %s190
      %s192 = sphi 0, %s190
      %s193 = sphi 0, %s192
      %s207 = sphi 0, %s193
      %s213 = sphi 0, %s215
      %s216 = sphi 0, %s213
      %s217 = sphi 0, %s216
      %s233 = sphi 0, %s217
    $region4: #{cross_attention_forward.1} parent=1 // loop_header_branch
      %28 = sbr.rel (%p26) target = $region8
    $region5: #{cross_attention_forward.1} parent=1 // loop_body
      %s30 = ssub.s32 %s25, 1
      %s31 = ssub.s32 %s25, 2
      %s32 = sadd.s32 %s25, 1
      %s33 = ssub.s32 %s25, %s32
      %p34 = scmp.eq.s32.totalorder %s33, 0
      %s36 = sadd.s32 %s35, 1
      %s37 = scalar_select %p34, %s35, %s36
      %p40 = pneg %p34
      %p41 = scmp.eq.s32.totalorder %s25, 1
      %p42 = por %p40, %p41
      %p43 = scmp.ne.s32.totalorder %s35, %s38
      %p44 = scmp.eq.s32.totalorder %s25, 0
      %p45 = por %p43, %p44
      %p46 = scmp.ne.s32.totalorder %s35, %s38
      %p47 = scmp.eq.s32.totalorder %s30, 1
      %p48 = por %p46, %p47
      %p49 = scmp.ne.s32.totalorder %s38, %s39
      %p50 = scmp.eq.s32.totalorder %s30, 0
      %p51 = por %p49, %p50
      %p52 = scmp.ne.s32.totalorder %s38, %s39
      %p53 = scmp.eq.s32.totalorder %s31, 1
      %p54 = por %p52, %p53
      %p56 = scmp.ne.s32.totalorder %s39, %s55
      %p57 = scmp.eq.s32.totalorder %s31, 0
      %p58 = por %p56, %p57
      %s59 = ssub.s32 %s25, %s32
      %p60 = scmp.eq.s32.totalorder %s59, 0
      %s62 = sadd.s32 %s61, 1
      %s63 = scalar_select %p60, %s61, %s62
      %p66 = pneg %p60
      %p67 = scmp.eq.s32.totalorder %s25, 1
      %p68 = por %p66, %p67
      %p69 = scmp.ne.s32.totalorder %s61, %s64
      %p70 = scmp.eq.s32.totalorder %s25, 0
      %p71 = por %p69, %p70
      %p72 = scmp.ne.s32.totalorder %s61, %s64
      %p73 = scmp.eq.s32.totalorder %s30, 1
      %p74 = por %p72, %p73
      %p75 = scmp.ne.s32.totalorder %s64, %s65
      %p76 = scmp.eq.s32.totalorder %s30, 0
      %p77 = por %p75, %p76
      %p78 = scmp.ne.s32.totalorder %s64, %s65
      %p79 = scmp.eq.s32.totalorder %s31, 1
      %p80 = por %p78, %p79
      %p82 = scmp.ne.s32.totalorder %s65, %s81
      %p83 = scmp.eq.s32.totalorder %s31, 0
      %p84 = por %p82, %p83
      %s86 = sadd.s32 %s85, 1
      %p89 = scmp.eq.s32.totalorder %s25, 1
      %p90 = scmp.ne.s32.totalorder %s85, %s87
      %p91 = scmp.eq.s32.totalorder %s25, 0
      %p92 = por %p90, %p91
      %p93 = scmp.ne.s32.totalorder %s85, %s87
      %p94 = scmp.eq.s32.totalorder %s30, 1
      %p95 = por %p93, %p94
      %p96 = scmp.ne.s32.totalorder %s87, %s88
      %p97 = scmp.eq.s32.totalorder %s30, 0
      %p98 = por %p96, %p97
      %p99 = scmp.ne.s32.totalorder %s87, %s88
      %p100 = scmp.eq.s32.totalorder %s31, 1
      %p101 = por %p99, %p100
      %p103 = scmp.ne.s32.totalorder %s88, %s102
      %p104 = scmp.eq.s32.totalorder %s31, 0
      %p105 = por %p103, %p104
      %s107 = sadd.s32 %s106, 1
      %p110 = scmp.eq.s32.totalorder %s25, 1
      %p111 = scmp.ne.s32.totalorder %s106, %s108
      %p112 = scmp.eq.s32.totalorder %s25, 0
      %p113 = por %p111, %p112
      %p114 = scmp.ne.s32.totalorder %s106, %s108
      %p115 = scmp.eq.s32.totalorder %s30, 1
      %p116 = por %p114, %p115
      %p117 = scmp.ne.s32.totalorder %s108, %s109
      %p118 = scmp.eq.s32.totalorder %s30, 0
      %p119 = por %p117, %p118
      %p120 = scmp.ne.s32.totalorder %s108, %s109
      %p121 = scmp.eq.s32.totalorder %s31, 1
      %p122 = por %p120, %p121
      %p124 = scmp.ne.s32.totalorder %s109, %s123
      %p125 = scmp.eq.s32.totalorder %s31, 0
      %p126 = por %p124, %p125
      %s128 = sadd.s32 %s127, 1
      %p131 = scmp.eq.s32.totalorder %s25, 1
      %p132 = scmp.ne.s32.totalorder %s127, %s129
      %p133 = scmp.eq.s32.totalorder %s25, 0
      %p134 = por %p132, %p133
      %p135 = scmp.ne.s32.totalorder %s127, %s129
      %p136 = scmp.eq.s32.totalorder %s30, 1
      %p137 = por %p135, %p136
      %p138 = scmp.ne.s32.totalorder %s129, %s130
      %p139 = scmp.eq.s32.totalorder %s30, 0
      %p140 = por %p138, %p139
      %p141 = scmp.ne.s32.totalorder %s129, %s130
      %p142 = scmp.eq.s32.totalorder %s31, 1
      %p143 = por %p141, %p142
      %p145 = scmp.ne.s32.totalorder %s130, %s144
      %p146 = scmp.eq.s32.totalorder %s31, 0
      %p147 = por %p145, %p146
      %s149 = sadd.s32 %s148, 1
      %p152 = scmp.eq.s32.totalorder %s25, 1
      %p153 = scmp.ne.s32.totalorder %s148, %s150
      %p154 = scmp.eq.s32.totalorder %s25, 0
      %p155 = por %p153, %p154
      %p156 = scmp.ne.s32.totalorder %s148, %s150
      %p157 = scmp.eq.s32.totalorder %s30, 1
      %p158 = por %p156, %p157
      %p159 = scmp.ne.s32.totalorder %s150, %s151
      %p160 = scmp.eq.s32.totalorder %s30, 0
      %p161 = por %p159, %p160
      %p162 = scmp.ne.s32.totalorder %s150, %s151
      %p163 = scmp.eq.s32.totalorder %s31, 1
      %p164 = por %p162, %p163
      %p166 = scmp.ne.s32.totalorder %s151, %s165
      %p167 = scmp.eq.s32.totalorder %s31, 0
      %p168 = por %p166, %p167
      %s170 = sadd.s32 %s169, 1
      %p173 = scmp.eq.s32.totalorder %s25, 1
      %p174 = scmp.ne.s32.totalorder %s169, %s171
      %p175 = scmp.eq.s32.totalorder %s25, 0
      %p176 = por %p174, %p175
      %p177 = scmp.ne.s32.totalorder %s169, %s171
      %p178 = scmp.eq.s32.totalorder %s30, 1
      %p179 = por %p177, %p178
      %p180 = scmp.ne.s32.totalorder %s171, %s172
      %p181 = scmp.eq.s32.totalorder %s30, 0
      %p182 = por %p180, %p181
      %p183 = scmp.ne.s32.totalorder %s171, %s172
      %p184 = scmp.eq.s32.totalorder %s31, 1
      %p185 = por %p183, %p184
      %p187 = scmp.ne.s32.totalorder %s172, %s186
      %p188 = scmp.eq.s32.totalorder %s31, 0
      %p189 = por %p187, %p188
      %s191 = sadd.s32 %s190, 1
      %p194 = scmp.eq.s32.totalorder %s25, 1
      %p195 = scmp.ne.s32.totalorder %s190, %s192
      %p196 = scmp.eq.s32.totalorder %s25, 0
      %p197 = por %p195, %p196
      %p198 = scmp.ne.s32.totalorder %s190, %s192
      %p199 = scmp.eq.s32.totalorder %s30, 1
      %p200 = por %p198, %p199
      %p201 = scmp.ne.s32.totalorder %s192, %s193
      %p202 = scmp.eq.s32.totalorder %s30, 0
      %p203 = por %p201, %p202
      %p204 = scmp.ne.s32.totalorder %s192, %s193
      %p205 = scmp.eq.s32.totalorder %s31, 1
      %p206 = por %p204, %p205
      %p208 = scmp.ne.s32.totalorder %s193, %s207
      %p209 = scmp.eq.s32.totalorder %s31, 0
      %p210 = por %p208, %p209
      %s211 = ssub.s32 %s25, %s32
      %p212 = scmp.eq.s32.totalorder %s211, 0
      %s214 = sadd.s32 %s213, 1
      %s215 = scalar_select %p212, %s213, %s214
      %p218 = pneg %p212
      %p219 = scmp.eq.s32.totalorder %s25, 1
      %p220 = por %p218, %p219
      %p221 = scmp.ne.s32.totalorder %s213, %s216
      %p222 = scmp.eq.s32.totalorder %s25, 0
      %p223 = por %p221, %p222
      %p224 = scmp.ne.s32.totalorder %s213, %s216
      %p225 = scmp.eq.s32.totalorder %s30, 1
      %p226 = por %p224, %p225
      %p227 = scmp.ne.s32.totalorder %s216, %s217
      %p228 = scmp.eq.s32.totalorder %s30, 0
      %p229 = por %p227, %p228
      %p230 = scmp.ne.s32.totalorder %s216, %s217
      %p231 = scmp.eq.s32.totalorder %s31, 1
      %p232 = por %p230, %p231
      %p234 = scmp.ne.s32.totalorder %s217, %s233
      %p235 = scmp.eq.s32.totalorder %s31, 0
      %p236 = por %p234, %p235
      %p237 = scmp.le.s32.totalorder 1, %s25
      %p238 = scmp.lt.s32.totalorder %s25, 3
      %p239 = pnand %p237, %p238
      %p240 = pneg %p239
      // Predicated region
      $region9: #{cross_attention_forward.1} parent=5 // pred_check
        _
      $region10: #{cross_attention_forward.1} parent=5 // pred_check_branch
        %242 = sbr.rel (%p239) target = $region12
      $region11: #{cross_attention_forward.1} parent=5 // pred_region
        %s243 = ssub.s32 %s25, 1
        // Predicated region
        $region13: #{cross_attention_forward.1} parent=11 // pred_check
          %p244 = pneg %p98
        $region14: #{cross_attention_forward.1} parent=11 // pred_check_branch
          %246 = sbr.rel (%p244) target = $region16
        $region15: #{cross_attention_forward.1} parent=11 // pred_region
          %248 = vsyncadd [#allocation6], 0
          %s249 = sshll.u32 %s2, 4
          %s250 = int_to_ptr.hbm [resolvable:$true] %s249
          %s251 = sshll.u32 [#allocation7], 4
          %s252 = int_to_ptr.vmem [resolvable:$true] %s251
          %257 = dma.hbm_to_vmem [thread:$0]  %s250, 512, %s252, [#allocation6], 128, 128, 8
        $region16: #{cross_attention_forward.1} parent=11 // pred_fallthru
          _
        // Predicated region
        $region17: #{cross_attention_forward.1} parent=11 // pred_check
          %p258 = pneg %p119
        $region18: #{cross_attention_forward.1} parent=11 // pred_check_branch
          %260 = sbr.rel (%p258) target = $region20
        $region19: #{cross_attention_forward.1} parent=11 // pred_region
          _
        $region20: #{cross_attention_forward.1} parent=11 // pred_fallthru
          _
        // Predicated region
        $region21: #{cross_attention_forward.1} parent=11 // pred_check
          %p261 = pneg %p140
        $region22: #{cross_attention_forward.1} parent=11 // pred_check_branch
          %263 = sbr.rel (%p261) target = $region24
        $region23: #{cross_attention_forward.1} parent=11 // pred_region
          %265 = vsyncadd [#allocation9], 0
          %s266 = sshll.u32 %s4, 4
          %s267 = int_to_ptr.hbm [resolvable:$true] %s266
          %s268 = sshll.u32 [#allocation8], 4
          %s269 = int_to_ptr.vmem [resolvable:$true] %s268
          %274 = dma.hbm_to_vmem [thread:$0]  %s267, 512, %s269, [#allocation9], 128, 128, 8
        $region24: #{cross_attention_forward.1} parent=11 // pred_fallthru
          _
        // Predicated region
        $region25: #{cross_attention_forward.1} parent=11 // pred_check
          %p275 = pneg %p161
        $region26: #{cross_attention_forward.1} parent=11 // pred_check_branch
          %277 = sbr.rel (%p275) target = $region28
        $region27: #{cross_attention_forward.1} parent=11 // pred_region
          %279 = vsyncadd [#allocation9], 0
          %s281 = sshll.u32 %s5, 4
          %s282 = int_to_ptr.hbm [resolvable:$true] %s281
          %s283 = sshll.u32 [#allocation10], 4
          %s284 = int_to_ptr.vmem [resolvable:$true] %s283
          %286 = dma.hbm_to_vmem [thread:$0]  %s282, 16, %s284, [#allocation9]
        $region28: #{cross_attention_forward.1} parent=11 // pred_fallthru
          _
        // Predicated region
        $region29: #{cross_attention_forward.1} parent=11 // pred_check
          %p287 = pneg %p182
        $region30: #{cross_attention_forward.1} parent=11 // pred_check_branch
          %289 = sbr.rel (%p287) target = $region32
        $region31: #{cross_attention_forward.1} parent=11 // pred_region
          %291 = vsyncadd [#allocation12], 0
          %s292 = sshll.u32 %s6, 4
          %s293 = int_to_ptr.hbm [resolvable:$true] %s292
          %s294 = sshll.u32 [#allocation11], 4
          %s295 = int_to_ptr.vmem [resolvable:$true] %s294
          %300 = dma.hbm_to_vmem [thread:$0]  %s293, 512, %s295, [#allocation12], 128, 128, 8
        $region32: #{cross_attention_forward.1} parent=11 // pred_fallthru
          _
        // Predicated region
        $region33: #{cross_attention_forward.1} parent=11 // pred_check
          %p301 = pneg %p203
        $region34: #{cross_attention_forward.1} parent=11 // pred_check_branch
          %303 = sbr.rel (%p301) target = $region36
        $region35: #{cross_attention_forward.1} parent=11 // pred_region
          _
        $region36: #{cross_attention_forward.1} parent=11 // pred_fallthru
          _
      $region12: #{cross_attention_forward.1} parent=5 // pred_fallthru
        _
      %p304 = scmp.lt.s32.totalorder %s25, 2
      // Predicated region
      $region37: #{cross_attention_forward.1} parent=5 // pred_check
        %p305 = pneg %p304
      $region38: #{cross_attention_forward.1} parent=5 // pred_check_branch
        %307 = sbr.rel (%p305) target = $region40
      $region39: #{cross_attention_forward.1} parent=5 // pred_region
        // Predicated region
        $region41: #{cross_attention_forward.1} parent=39 // pred_check
          %p308 = pneg %p45
        $region42: #{cross_attention_forward.1} parent=39 // pred_check_branch
          %310 = sbr.rel (%p308) target = $region44
        $region43: #{cross_attention_forward.1} parent=39 // pred_region
          %s311 = sand.u32 %s35, 1
          %s312 = scalar_lea.sflag [#allocation3], %s311
          %s313 = sand.u32 %s35, 1
          %s314 = smul.addr %s313, 8
          %s315 = scalar_lea.vmem [#allocation2], %s314
          %317 = vsyncadd %s312, 0
          %s318 = smul.addr %s25, 8
          %s319 = scalar_lea.hbm %s0, %s318
          %s321 = sshll.u32 %s319, 4
          %s322 = int_to_ptr.hbm [resolvable:$true] %s321
          %s323 = sshll.u32 %s315, 4
          %s324 = int_to_ptr.vmem [resolvable:$true] %s323
          %326 = dma.hbm_to_vmem [thread:$0]  %s322, 128, %s324, %s312
        $region44: #{cross_attention_forward.1} parent=39 // pred_fallthru
          _
        // Predicated region
        $region45: #{cross_attention_forward.1} parent=39 // pred_check
          %p327 = pneg %p71
        $region46: #{cross_attention_forward.1} parent=39 // pred_check_branch
          %329 = sbr.rel (%p327) target = $region48
        $region47: #{cross_attention_forward.1} parent=39 // pred_region
          %s330 = sand.u32 %s25, 1
          %s331 = scalar_lea.sflag [#allocation6], %s330
          %s332 = sand.u32 %s61, 1
          %s333 = smul.addr %s332, 16
          %s334 = scalar_lea.vmem [#allocation5], %s333
          %336 = vsyncadd %s331, 0
          %s337 = smul.addr %s25, 2
          %s338 = smul.addr %s337, 8
          %s339 = scalar_lea.hbm %s1, %s338
          %s340 = sshll.u32 %s339, 4
          %s341 = int_to_ptr.hbm [resolvable:$true] %s340
          %s342 = sshll.u32 %s334, 4
          %s343 = int_to_ptr.vmem [resolvable:$true] %s342
          %348 = dma.hbm_to_vmem [thread:$0]  %s341, 256, %s343, %s331, 128, 128, 8
        $region48: #{cross_attention_forward.1} parent=39 // pred_fallthru
          _
      $region40: #{cross_attention_forward.1} parent=5 // pred_fallthru
        _
      %p349 = scmp.le.s32.totalorder 1, %s25
      %p350 = scmp.lt.s32.totalorder %s25, 3
      %p351 = pnand %p349, %p350
      %p352 = pneg %p351
      // Predicated region
      $region49: #{cross_attention_forward.1} parent=5 // pred_check
        _
      $region50: #{cross_attention_forward.1} parent=5 // pred_check_branch
        %354 = sbr.rel (%p351) target = $region52
      $region51: #{cross_attention_forward.1} parent=5 // pred_region
        %s355 = ssub.s32 %s25, 1
        %s356 = sand.u32 %s38, 1
        %s357 = scalar_lea.sflag [#allocation3], %s356
        %s358 = sand.u32 %s38, 1
        %s359 = smul.addr %s358, 8
        %s360 = scalar_lea.vmem [#allocation2], %s359
        // Predicated region
        $region53: #{cross_attention_forward.1} parent=51 // pred_check
          %p361 = pneg %p51
        $region54: #{cross_attention_forward.1} parent=51 // pred_check_branch
          %363 = sbr.rel (%p361) target = $region56
        $region55: #{cross_attention_forward.1} parent=51 // pred_region
          %365 = dma.done %s357, 128
        $region56: #{cross_attention_forward.1} parent=51 // pred_fallthru
          _
        %s366 = sand.u32 %s30, 1
        %s367 = scalar_lea.sflag [#allocation6], %s366
        %s368 = sand.u32 %s64, 1
        %s369 = smul.addr %s368, 16
        %s370 = scalar_lea.vmem [#allocation5], %s369
        // Predicated region
        $region57: #{cross_attention_forward.1} parent=51 // pred_check
          %p371 = pneg %p77
        $region58: #{cross_attention_forward.1} parent=51 // pred_check_branch
          %373 = sbr.rel (%p371) target = $region60
        $region59: #{cross_attention_forward.1} parent=51 // pred_region
          %375 = dma.done %s367, 256
        $region60: #{cross_attention_forward.1} parent=51 // pred_fallthru
          _
        // Predicated region
        $region61: #{cross_attention_forward.1} parent=51 // pred_check
          %p376 = pneg %p98
        $region62: #{cross_attention_forward.1} parent=51 // pred_check_branch
          %378 = sbr.rel (%p376) target = $region64
        $region63: #{cross_attention_forward.1} parent=51 // pred_region
          %380 = dma.done [#allocation6], 512
        $region64: #{cross_attention_forward.1} parent=51 // pred_fallthru
          _
        // Predicated region
        $region65: #{cross_attention_forward.1} parent=51 // pred_check
          %p381 = pneg %p140
        $region66: #{cross_attention_forward.1} parent=51 // pred_check_branch
          %383 = sbr.rel (%p381) target = $region68
        $region67: #{cross_attention_forward.1} parent=51 // pred_region
          %385 = dma.done [#allocation9], 512
        $region68: #{cross_attention_forward.1} parent=51 // pred_fallthru
          _
        // Predicated region
        $region69: #{cross_attention_forward.1} parent=51 // pred_check
          %p386 = pneg %p161
        $region70: #{cross_attention_forward.1} parent=51 // pred_check_branch
          %388 = sbr.rel (%p386) target = $region72
        $region71: #{cross_attention_forward.1} parent=51 // pred_region
          %390 = dma.done [#allocation9], 16
        $region72: #{cross_attention_forward.1} parent=51 // pred_fallthru
          _
        // Predicated region
        $region73: #{cross_attention_forward.1} parent=51 // pred_check
          %p391 = pneg %p182
        $region74: #{cross_attention_forward.1} parent=51 // pred_check_branch
          %393 = sbr.rel (%p391) target = $region76
        $region75: #{cross_attention_forward.1} parent=51 // pred_region
          %395 = dma.done [#allocation12], 512
        $region76: #{cross_attention_forward.1} parent=51 // pred_fallthru
          _
        %s396 = sand.u32 %s38, 1
        %s397 = scalar_lea.sflag [#allocation3], %s396
        %s398 = sand.u32 %s38, 1
        %s399 = smul.addr %s398, 8
        %s400 = scalar_lea.vmem [#allocation2], %s399
        %p401 = pneg %p51
        %p402 = pneg %p48
        %s403 = sand.u32 %s30, 1
        %s404 = scalar_lea.sflag [#allocation6], %s403
        %s405 = sand.u32 %s64, 1
        %s406 = smul.addr %s405, 16
        %s407 = scalar_lea.vmem [#allocation5], %s406
        %p408 = pneg %p77
        %p409 = pneg %p74
        %p410 = pneg %p98
        %p411 = pneg %p95
        %p412 = pneg %p119
        %p413 = pneg %p116
        %p414 = pneg %p140
        %p415 = pneg %p137
        %p416 = pneg %p161
        %p417 = pneg %p158
        %p418 = pneg %p182
        %p419 = pneg %p179
        %p420 = pneg %p203
        %p421 = pneg %p200
        %p422 = pneg %p229
        %p423 = pneg %p226
        %s424 = sand.u32 %s216, 1
        %s425 = scalar_lea.sflag [#allocation4], %s424
        %s426 = sand.u32 %s216, 1
        %s427 = smul.addr %s426, 8
        %s428 = scalar_lea.vmem [#allocation13], %s427
        %v429 = vld [vmem:[%s360] sm:$0xff]
        %v430 = vld [vmem:[%s370] sm:$0xff]
        %v431 = vld [vmem:[%s370 + $0x8] sm:$0xff]
        %v432 = vld [vmem:[#allocation7] sm:$0xff]
        %v433 = vld [vmem:[#allocation7 + $0x8] sm:$0xff]
        %v434 = vld [vmem:[#allocation7 + $0x10] sm:$0xff]
        %v435 = vld [vmem:[#allocation7 + $0x18] sm:$0xff]
        %v436 = vld [vmem:[%s3] sm:$0x1]
        %v438 = vperm.slane %v436, 0
        %vm440 = vcmask 261120
        %v442 = vsel %vm440, %v429, 0
        %444 = vmatpush.msra.mxu0 0.0
        %445 = vmatpush.msra.mxu0 0.0
        %446 = vmatpush.msra.mxu0 0.0
        %447 = vmatpush.msra.mxu0 0.0
        %448 = vmatpush.msra.mxu0 0.0
        %449 = vmatpush.msra.mxu0 0.0
        %450 = vmatpush.msra.mxu0 0.0
        %451 = vmatpush.msra.mxu0 0.0
        %452 = vmatpush.msra.mxu0 0.0
        %453 = vmatpush.msra.mxu0 0.0
        %454 = vmatpush.msra.mxu0 0.0
        %455 = vmatpush.msra.mxu0 0.0
        %456 = vmatpush.msra.mxu0 %v435
        %457 = vmatpush.msra.mxu0 %v434
        %458 = vmatpush.msra.mxu0 %v433
        %459 = vmatpush.msra.mxu0 %v432
        %460 = vmatmul.f32.gmra.mxu0 %v442
        %v461 = vpop.f32.mrf.mxu0
        %v462 = vadd.f32 %v438, %v461
        %463 = vdwg.mxu0
        %v464 = vld [vmem:[#allocation8] sm:$0xff]
        %v465 = vld [vmem:[#allocation8 + $0x8] sm:$0xff]
        %v466 = vld [vmem:[#allocation8 + $0x10] sm:$0xff]
        %v467 = vld [vmem:[#allocation8 + $0x18] sm:$0xff]
        %v468 = vld [vmem:[#allocation10] sm:$0x1]
        %v470 = vperm.slane %v468, 0
        %v473 = vsel %vm440, %v430, 0
        %v476 = vsel %vm440, %v431, 0
        %478 = vmatpush.msra.mxu0 0.0
        %479 = vmatpush.msra.mxu0 0.0
        %480 = vmatpush.msra.mxu0 0.0
        %481 = vmatpush.msra.mxu0 0.0
        %482 = vmatpush.msra.mxu0 0.0
        %483 = vmatpush.msra.mxu0 0.0
        %484 = vmatpush.msra.mxu0 0.0
        %485 = vmatpush.msra.mxu0 0.0
        %486 = vmatpush.msra.mxu0 0.0
        %487 = vmatpush.msra.mxu0 0.0
        %488 = vmatpush.msra.mxu0 0.0
        %489 = vmatpush.msra.mxu0 0.0
        %490 = vmatpush.msra.mxu0 %v467
        %491 = vmatpush.msra.mxu0 %v466
        %492 = vmatpush.msra.mxu0 %v465
        %493 = vmatpush.msra.mxu0 %v464
        %494 = vmatmul.f32.gmra.mxu0 %v473
        %v495 = vpop.f32.mrf.mxu0
        %v496 = vadd.f32 %v470, %v495
        %497 = vmatmul.f32.gmra.mxu0 %v476
        %v498 = vpop.f32.mrf.mxu0
        %v499 = vadd.f32 %v470, %v498
        %500 = vdwg.mxu0
        %502 = vrot.lane.b32.xlu0 %v462, 124
        %v503 = vpop.permute.xlu0 %502
        %504 = vrot.lane.b32.xlu0 %v462, 120
        %v505 = vpop.permute.xlu0 %504
        %506 = vrot.lane.b32.xlu0 %v462, 116
        %v507 = vpop.permute.xlu0 %506
        %508 = vrot.lane.b32.xlu0 %v462, 112
        %v509 = vpop.permute.xlu0 %508
        %510 = vrot.lane.b32.xlu0 %v462, 108
        %v511 = vpop.permute.xlu0 %510
        %512 = vrot.lane.b32.xlu0 %v462, 104
        %v513 = vpop.permute.xlu0 %512
        %514 = vrot.lane.b32.xlu0 %v462, 100
        %v515 = vpop.permute.xlu0 %514
        %518 = vrot.lane.b32.xlu0 %v496, 124
        %v519 = vpop.permute.xlu0 %518
        %520 = vrot.lane.b32.xlu0 %v499, 124
        %v521 = vpop.permute.xlu0 %520
        %522 = vrot.lane.b32.xlu0 %v496, 120
        %v523 = vpop.permute.xlu0 %522
        %524 = vrot.lane.b32.xlu0 %v499, 120
        %v525 = vpop.permute.xlu0 %524
        %526 = vrot.lane.b32.xlu0 %v496, 116
        %v527 = vpop.permute.xlu0 %526
        %528 = vrot.lane.b32.xlu0 %v499, 116
        %v529 = vpop.permute.xlu0 %528
        %530 = vrot.lane.b32.xlu0 %v496, 112
        %v531 = vpop.permute.xlu0 %530
        %532 = vrot.lane.b32.xlu0 %v499, 112
        %v533 = vpop.permute.xlu0 %532
        %534 = vrot.lane.b32.xlu0 %v496, 108
        %v535 = vpop.permute.xlu0 %534
        %536 = vrot.lane.b32.xlu0 %v499, 108
        %v537 = vpop.permute.xlu0 %536
        %538 = vrot.lane.b32.xlu0 %v496, 104
        %v539 = vpop.permute.xlu0 %538
        %540 = vrot.lane.b32.xlu0 %v499, 104
        %v541 = vpop.permute.xlu0 %540
        %542 = vrot.lane.b32.xlu0 %v496, 100
        %v543 = vpop.permute.xlu0 %542
        %544 = vrot.lane.b32.xlu0 %v499, 100
        %v545 = vpop.permute.xlu0 %544
        %vm546 = vcmask 31744
        %v547 = vsel %vm546, %v462, 0
        %v549 = vsel %vm546, %v496, 0
        %v551 = vsel %vm546, %v499, 0
        %553 = vmatpush.xpose.msra.mxu0 0.0
        %554 = vmatpush.xpose.msra.mxu0 0.0
        %555 = vmatpush.xpose.msra.mxu0 0.0
        %556 = vmatpush.xpose.msra.mxu0 0.0
        %557 = vmatpush.xpose.msra.mxu0 0.0
        %558 = vmatpush.xpose.msra.mxu0 0.0
        %559 = vmatpush.xpose.msra.mxu0 0.0
        %560 = vmatpush.xpose.msra.mxu0 0.0
        %561 = vmatpush.xpose.msra.mxu0 0.0
        %562 = vmatpush.xpose.msra.mxu0 0.0
        %563 = vmatpush.xpose.msra.mxu0 0.0
        %564 = vmatpush.xpose.msra.mxu0 0.0
        %565 = vmatpush.xpose.msra.mxu0 0.0
        %566 = vmatpush.xpose.msra.mxu0 0.0
        %567 = vmatpush.xpose.msra.mxu0 %v551
        %568 = vmatpush.xpose.msra.mxu0 %v549
        %569 = vmatmul.f32.gmra.mxu0 %v547
        %v570 = vpop.f32.mrf.mxu0
        %v571 = vadd.f32 0.0, %v570
        %572 = vdwg.mxu0
        %v573 = vsel %vm546, %v503, 0
        %v575 = vsel %vm546, %v519, 0
        %v577 = vsel %vm546, %v521, 0
        %579 = vmatpush.xpose.msra.mxu0 0.0
        %580 = vmatpush.xpose.msra.mxu0 0.0
        %581 = vmatpush.xpose.msra.mxu0 0.0
        %582 = vmatpush.xpose.msra.mxu0 0.0
        %583 = vmatpush.xpose.msra.mxu0 0.0
        %584 = vmatpush.xpose.msra.mxu0 0.0
        %585 = vmatpush.xpose.msra.mxu0 0.0
        %586 = vmatpush.xpose.msra.mxu0 0.0
        %587 = vmatpush.xpose.msra.mxu0 0.0
        %588 = vmatpush.xpose.msra.mxu0 0.0
        %589 = vmatpush.xpose.msra.mxu0 0.0
        %590 = vmatpush.xpose.msra.mxu0 0.0
        %591 = vmatpush.xpose.msra.mxu0 0.0
        %592 = vmatpush.xpose.msra.mxu0 0.0
        %593 = vmatpush.xpose.msra.mxu0 %v577
        %594 = vmatpush.xpose.msra.mxu0 %v575
        %595 = vmatmul.f32.gmra.mxu0 %v573
        %v596 = vpop.f32.mrf.mxu0
        %v597 = vadd.f32 0.0, %v596
        %598 = vdwg.mxu0
        %v599 = vsel %vm546, %v505, 0
        %v601 = vsel %vm546, %v523, 0
        %v603 = vsel %vm546, %v525, 0
        %605 = vmatpush.xpose.msra.mxu0 0.0
        %606 = vmatpush.xpose.msra.mxu0 0.0
        %607 = vmatpush.xpose.msra.mxu0 0.0
        %608 = vmatpush.xpose.msra.mxu0 0.0
        %609 = vmatpush.xpose.msra.mxu0 0.0
        %610 = vmatpush.xpose.msra.mxu0 0.0
        %611 = vmatpush.xpose.msra.mxu0 0.0
        %612 = vmatpush.xpose.msra.mxu0 0.0
        %613 = vmatpush.xpose.msra.mxu0 0.0
        %614 = vmatpush.xpose.msra.mxu0 0.0
        %615 = vmatpush.xpose.msra.mxu0 0.0
        %616 = vmatpush.xpose.msra.mxu0 0.0
        %617 = vmatpush.xpose.msra.mxu0 0.0
        %618 = vmatpush.xpose.msra.mxu0 0.0
        %619 = vmatpush.xpose.msra.mxu0 %v603
        %620 = vmatpush.xpose.msra.mxu0 %v601
        %621 = vmatmul.f32.gmra.mxu0 %v599
        %v622 = vpop.f32.mrf.mxu0
        %v623 = vadd.f32 0.0, %v622
        %624 = vdwg.mxu0
        %v625 = vsel %vm546, %v507, 0
        %v627 = vsel %vm546, %v527, 0
        %v629 = vsel %vm546, %v529, 0
        %631 = vmatpush.xpose.msra.mxu0 0.0
        %632 = vmatpush.xpose.msra.mxu0 0.0
        %633 = vmatpush.xpose.msra.mxu0 0.0
        %634 = vmatpush.xpose.msra.mxu0 0.0
        %635 = vmatpush.xpose.msra.mxu0 0.0
        %636 = vmatpush.xpose.msra.mxu0 0.0
        %637 = vmatpush.xpose.msra.mxu0 0.0
        %638 = vmatpush.xpose.msra.mxu0 0.0
        %639 = vmatpush.xpose.msra.mxu0 0.0
        %640 = vmatpush.xpose.msra.mxu0 0.0
        %641 = vmatpush.xpose.msra.mxu0 0.0
        %642 = vmatpush.xpose.msra.mxu0 0.0
        %643 = vmatpush.xpose.msra.mxu0 0.0
        %644 = vmatpush.xpose.msra.mxu0 0.0
        %645 = vmatpush.xpose.msra.mxu0 %v629
        %646 = vmatpush.xpose.msra.mxu0 %v627
        %647 = vmatmul.f32.gmra.mxu0 %v625
        %v648 = vpop.f32.mrf.mxu0
        %v649 = vadd.f32 0.0, %v648
        %650 = vdwg.mxu0
        %v651 = vsel %vm546, %v509, 0
        %v653 = vsel %vm546, %v531, 0
        %v655 = vsel %vm546, %v533, 0
        %657 = vmatpush.xpose.msra.mxu0 0.0
        %658 = vmatpush.xpose.msra.mxu0 0.0
        %659 = vmatpush.xpose.msra.mxu0 0.0
        %660 = vmatpush.xpose.msra.mxu0 0.0
        %661 = vmatpush.xpose.msra.mxu0 0.0
        %662 = vmatpush.xpose.msra.mxu0 0.0
        %663 = vmatpush.xpose.msra.mxu0 0.0
        %664 = vmatpush.xpose.msra.mxu0 0.0
        %665 = vmatpush.xpose.msra.mxu0 0.0
        %666 = vmatpush.xpose.msra.mxu0 0.0
        %667 = vmatpush.xpose.msra.mxu0 0.0
        %668 = vmatpush.xpose.msra.mxu0 0.0
        %669 = vmatpush.xpose.msra.mxu0 0.0
        %670 = vmatpush.xpose.msra.mxu0 0.0
        %671 = vmatpush.xpose.msra.mxu0 %v655
        %672 = vmatpush.xpose.msra.mxu0 %v653
        %673 = vmatmul.f32.gmra.mxu0 %v651
        %v674 = vpop.f32.mrf.mxu0
        %v675 = vadd.f32 0.0, %v674
        %676 = vdwg.mxu0
        %v677 = vsel %vm546, %v511, 0
        %v679 = vsel %vm546, %v535, 0
        %v681 = vsel %vm546, %v537, 0
        %683 = vmatpush.xpose.msra.mxu0 0.0
        %684 = vmatpush.xpose.msra.mxu0 0.0
        %685 = vmatpush.xpose.msra.mxu0 0.0
        %686 = vmatpush.xpose.msra.mxu0 0.0
        %687 = vmatpush.xpose.msra.mxu0 0.0
        %688 = vmatpush.xpose.msra.mxu0 0.0
        %689 = vmatpush.xpose.msra.mxu0 0.0
        %690 = vmatpush.xpose.msra.mxu0 0.0
        %691 = vmatpush.xpose.msra.mxu0 0.0
        %692 = vmatpush.xpose.msra.mxu0 0.0
        %693 = vmatpush.xpose.msra.mxu0 0.0
        %694 = vmatpush.xpose.msra.mxu0 0.0
        %695 = vmatpush.xpose.msra.mxu0 0.0
        %696 = vmatpush.xpose.msra.mxu0 0.0
        %697 = vmatpush.xpose.msra.mxu0 %v681
        %698 = vmatpush.xpose.msra.mxu0 %v679
        %699 = vmatmul.f32.gmra.mxu0 %v677
        %v700 = vpop.f32.mrf.mxu0
        %v701 = vadd.f32 0.0, %v700
        %702 = vdwg.mxu0
        %v703 = vsel %vm546, %v513, 0
        %v705 = vsel %vm546, %v539, 0
        %v707 = vsel %vm546, %v541, 0
        %709 = vmatpush.xpose.msra.mxu0 0.0
        %710 = vmatpush.xpose.msra.mxu0 0.0
        %711 = vmatpush.xpose.msra.mxu0 0.0
        %712 = vmatpush.xpose.msra.mxu0 0.0
        %713 = vmatpush.xpose.msra.mxu0 0.0
        %714 = vmatpush.xpose.msra.mxu0 0.0
        %715 = vmatpush.xpose.msra.mxu0 0.0
        %716 = vmatpush.xpose.msra.mxu0 0.0
        %717 = vmatpush.xpose.msra.mxu0 0.0
        %718 = vmatpush.xpose.msra.mxu0 0.0
        %719 = vmatpush.xpose.msra.mxu0 0.0
        %720 = vmatpush.xpose.msra.mxu0 0.0
        %721 = vmatpush.xpose.msra.mxu0 0.0
        %722 = vmatpush.xpose.msra.mxu0 0.0
        %723 = vmatpush.xpose.msra.mxu0 %v707
        %724 = vmatpush.xpose.msra.mxu0 %v705
        %725 = vmatmul.f32.gmra.mxu0 %v703
        %v726 = vpop.f32.mrf.mxu0
        %v727 = vadd.f32 0.0, %v726
        %728 = vdwg.mxu0
        %v729 = vsel %vm546, %v515, 0
        %v731 = vsel %vm546, %v543, 0
        %v733 = vsel %vm546, %v545, 0
        %735 = vmatpush.xpose.msra.mxu0 0.0
        %736 = vmatpush.xpose.msra.mxu0 0.0
        %737 = vmatpush.xpose.msra.mxu0 0.0
        %738 = vmatpush.xpose.msra.mxu0 0.0
        %739 = vmatpush.xpose.msra.mxu0 0.0
        %740 = vmatpush.xpose.msra.mxu0 0.0
        %741 = vmatpush.xpose.msra.mxu0 0.0
        %742 = vmatpush.xpose.msra.mxu0 0.0
        %743 = vmatpush.xpose.msra.mxu0 0.0
        %744 = vmatpush.xpose.msra.mxu0 0.0
        %745 = vmatpush.xpose.msra.mxu0 0.0
        %746 = vmatpush.xpose.msra.mxu0 0.0
        %747 = vmatpush.xpose.msra.mxu0 0.0
        %748 = vmatpush.xpose.msra.mxu0 0.0
        %749 = vmatpush.xpose.msra.mxu0 %v733
        %750 = vmatpush.xpose.msra.mxu0 %v731
        %751 = vmatmul.f32.gmra.mxu0 %v729
        %v752 = vpop.f32.mrf.mxu0
        %v753 = vadd.f32 0.0, %v752
        %754 = vdwg.mxu0
        %vm755 = vcmask 130048
        %v756 = vsel %vm755, %v571, -inf
        %757 = vmax.xlane.f32.xlu0 %v756
        %v758 = vpop.xlane.xlu0 %757
        %v759 = vsel %vm755, %v597, -inf
        %760 = vmax.xlane.f32.xlu0 %v759
        %v761 = vpop.xlane.xlu0 %760
        %v762 = vsel %vm755, %v623, -inf
        %763 = vmax.xlane.f32.xlu0 %v762
        %v764 = vpop.xlane.xlu0 %763
        %v765 = vsel %vm755, %v649, -inf
        %766 = vmax.xlane.f32.xlu0 %v765
        %v767 = vpop.xlane.xlu0 %766
        %v768 = vsel %vm755, %v675, -inf
        %769 = vmax.xlane.f32.xlu0 %v768
        %v770 = vpop.xlane.xlu0 %769
        %v771 = vsel %vm755, %v701, -inf
        %772 = vmax.xlane.f32.xlu0 %v771
        %v773 = vpop.xlane.xlu0 %772
        %v774 = vsel %vm755, %v727, -inf
        %775 = vmax.xlane.f32.xlu0 %v774
        %v776 = vpop.xlane.xlu0 %775
        %v777 = vsel %vm755, %v753, -inf
        %778 = vmax.xlane.f32.xlu0 %v777
        %v779 = vpop.xlane.xlu0 %778
        %v780 = vsub.f32 %v571, %v758
        %v781 = vsub.f32 %v597, %v761
        %v782 = vsub.f32 %v623, %v764
        %v783 = vsub.f32 %v649, %v767
        %v784 = vsub.f32 %v675, %v770
        %v785 = vsub.f32 %v701, %v773
        %v786 = vsub.f32 %v727, %v776
        %v787 = vsub.f32 %v753, %v779
        %v788 = vmul.f32 %v780, 1.442695
        %v789 = vpow.pop %v788
        %v790 = vmul.f32 %v781, 1.442695
        %v791 = vpow.pop %v790
        %v792 = vmul.f32 %v782, 1.442695
        %v793 = vpow.pop %v792
        %v794 = vmul.f32 %v783, 1.442695
        %v795 = vpow.pop %v794
        %v796 = vmul.f32 %v784, 1.442695
        %v797 = vpow.pop %v796
        %v798 = vmul.f32 %v785, 1.442695
        %v799 = vpow.pop %v798
        %v800 = vmul.f32 %v786, 1.442695
        %v801 = vpow.pop %v800
        %v802 = vmul.f32 %v787, 1.442695
        %v803 = vpow.pop %v802
        %v804 = vsel %vm755, %v789, 0.0
        %805 = vadd.xlane.f32.xlu0 %v804
        %v806 = vpop.xlane.xlu0 %805
        %v807 = vsel %vm755, %v791, 0.0
        %808 = vadd.xlane.f32.xlu0 %v807
        %v809 = vpop.xlane.xlu0 %808
        %v810 = vsel %vm755, %v793, 0.0
        %811 = vadd.xlane.f32.xlu0 %v810
        %v812 = vpop.xlane.xlu0 %811
        %v813 = vsel %vm755, %v795, 0.0
        %814 = vadd.xlane.f32.xlu0 %v813
        %v815 = vpop.xlane.xlu0 %814
        %v816 = vsel %vm755, %v797, 0.0
        %817 = vadd.xlane.f32.xlu0 %v816
        %v818 = vpop.xlane.xlu0 %817
        %v819 = vsel %vm755, %v799, 0.0
        %820 = vadd.xlane.f32.xlu0 %v819
        %v821 = vpop.xlane.xlu0 %820
        %v822 = vsel %vm755, %v801, 0.0
        %823 = vadd.xlane.f32.xlu0 %v822
        %v824 = vpop.xlane.xlu0 %823
        %v825 = vsel %vm755, %v803, 0.0
        %826 = vadd.xlane.f32.xlu0 %v825
        %v827 = vpop.xlane.xlu0 %826
        %v828 = vrcp.pop %v806
        %v829 = vmul.f32 %v806, %v828
        %v830 = vsub.f32 1.0, %v829
        %v831 = vmul.f32 %v828, %v830
        %v832 = vadd.f32 %v828, %v831
        %vm833 = vweird.f32 %v806
        %vm834 = vweird.f32 %v828
        %vm835 = vmor %vm833, %vm834
        %v836 = vsel %vm835, %v828, %v832
        %v837 = vand.u32 2147483647, %v806
        %vm838 = vcmp.eq.f32.partialorder %v837, 8.507059e+37
        %v839 = vand.u32 %v806, 2147483648
        %v840 = vor.u32 1.1754944e-38, %v839
        %v841 = vsel %vm838, %v840, %v836
        %v842 = vmul.f32 %v789, %v841
        %v843 = vrcp.pop %v809
        %v844 = vmul.f32 %v809, %v843
        %v845 = vsub.f32 1.0, %v844
        %v846 = vmul.f32 %v843, %v845
        %v847 = vadd.f32 %v843, %v846
        %vm848 = vweird.f32 %v809
        %vm849 = vweird.f32 %v843
        %vm850 = vmor %vm848, %vm849
        %v851 = vsel %vm850, %v843, %v847
        %v852 = vand.u32 2147483647, %v809
        %vm853 = vcmp.eq.f32.partialorder %v852, 8.507059e+37
        %v854 = vand.u32 %v809, 2147483648
        %v855 = vor.u32 1.1754944e-38, %v854
        %v856 = vsel %vm853, %v855, %v851
        %v857 = vmul.f32 %v791, %v856
        %v858 = vrcp.pop %v812
        %v859 = vmul.f32 %v812, %v858
        %v860 = vsub.f32 1.0, %v859
        %v861 = vmul.f32 %v858, %v860
        %v862 = vadd.f32 %v858, %v861
        %vm863 = vweird.f32 %v812
        %vm864 = vweird.f32 %v858
        %vm865 = vmor %vm863, %vm864
        %v866 = vsel %vm865, %v858, %v862
        %v867 = vand.u32 2147483647, %v812
        %vm868 = vcmp.eq.f32.partialorder %v867, 8.507059e+37
        %v869 = vand.u32 %v812, 2147483648
        %v870 = vor.u32 1.1754944e-38, %v869
        %v871 = vsel %vm868, %v870, %v866
        %v872 = vmul.f32 %v793, %v871
        %v873 = vrcp.pop %v815
        %v874 = vmul.f32 %v815, %v873
        %v875 = vsub.f32 1.0, %v874
        %v876 = vmul.f32 %v873, %v875
        %v877 = vadd.f32 %v873, %v876
        %vm878 = vweird.f32 %v815
        %vm879 = vweird.f32 %v873
        %vm880 = vmor %vm878, %vm879
        %v881 = vsel %vm880, %v873, %v877
        %v882 = vand.u32 2147483647, %v815
        %vm883 = vcmp.eq.f32.partialorder %v882, 8.507059e+37
        %v884 = vand.u32 %v815, 2147483648
        %v885 = vor.u32 1.1754944e-38, %v884
        %v886 = vsel %vm883, %v885, %v881
        %v887 = vmul.f32 %v795, %v886
        %v888 = vrcp.pop %v818
        %v889 = vmul.f32 %v818, %v888
        %v890 = vsub.f32 1.0, %v889
        %v891 = vmul.f32 %v888, %v890
        %v892 = vadd.f32 %v888, %v891
        %vm893 = vweird.f32 %v818
        %vm894 = vweird.f32 %v888
        %vm895 = vmor %vm893, %vm894
        %v896 = vsel %vm895, %v888, %v892
        %v897 = vand.u32 2147483647, %v818
        %vm898 = vcmp.eq.f32.partialorder %v897, 8.507059e+37
        %v899 = vand.u32 %v818, 2147483648
        %v900 = vor.u32 1.1754944e-38, %v899
        %v901 = vsel %vm898, %v900, %v896
        %v902 = vmul.f32 %v797, %v901
        %v903 = vrcp.pop %v821
        %v904 = vmul.f32 %v821, %v903
        %v905 = vsub.f32 1.0, %v904
        %v906 = vmul.f32 %v903, %v905
        %v907 = vadd.f32 %v903, %v906
        %vm908 = vweird.f32 %v821
        %vm909 = vweird.f32 %v903
        %vm910 = vmor %vm908, %vm909
        %v911 = vsel %vm910, %v903, %v907
        %v912 = vand.u32 2147483647, %v821
        %vm913 = vcmp.eq.f32.partialorder %v912, 8.507059e+37
        %v914 = vand.u32 %v821, 2147483648
        %v915 = vor.u32 1.1754944e-38, %v914
        %v916 = vsel %vm913, %v915, %v911
        %v917 = vmul.f32 %v799, %v916
        %v918 = vrcp.pop %v824
        %v919 = vmul.f32 %v824, %v918
        %v920 = vsub.f32 1.0, %v919
        %v921 = vmul.f32 %v918, %v920
        %v922 = vadd.f32 %v918, %v921
        %vm923 = vweird.f32 %v824
        %vm924 = vweird.f32 %v918
        %vm925 = vmor %vm923, %vm924
        %v926 = vsel %vm925, %v918, %v922
        %v927 = vand.u32 2147483647, %v824
        %vm928 = vcmp.eq.f32.partialorder %v927, 8.507059e+37
        %v929 = vand.u32 %v824, 2147483648
        %v930 = vor.u32 1.1754944e-38, %v929
        %v931 = vsel %vm928, %v930, %v926
        %v932 = vmul.f32 %v801, %v931
        %v933 = vrcp.pop %v827
        %v934 = vmul.f32 %v827, %v933
        %v935 = vsub.f32 1.0, %v934
        %v936 = vmul.f32 %v933, %v935
        %v937 = vadd.f32 %v933, %v936
        %vm938 = vweird.f32 %v827
        %vm939 = vweird.f32 %v933
        %vm940 = vmor %vm938, %vm939
        %v941 = vsel %vm940, %v933, %v937
        %v942 = vand.u32 2147483647, %v827
        %vm943 = vcmp.eq.f32.partialorder %v942, 8.507059e+37
        %v944 = vand.u32 %v827, 2147483648
        %v945 = vor.u32 1.1754944e-38, %v944
        %v946 = vsel %vm943, %v945, %v941
        %v947 = vmul.f32 %v803, %v946
        %948 = vrot.lane.b32.xlu0 %v496, 96
        %v949 = vpop.permute.xlu0 %948
        %950 = vrot.lane.b32.xlu0 %v499, 96
        %v951 = vpop.permute.xlu0 %950
        %v955 = vsel %vm755, %v842, 0
        %957 = vmatpush.msra.mxu0 0.0
        %958 = vmatpush.msra.mxu0 0.0
        %959 = vmatpush.msra.mxu0 0.0
        %960 = vmatpush.msra.mxu0 0.0
        %961 = vmatpush.msra.mxu0 0.0
        %962 = vmatpush.msra.mxu0 0.0
        %963 = vmatpush.msra.mxu0 0.0
        %964 = vmatpush.msra.mxu0 0.0
        %965 = vmatpush.msra.mxu0 0.0
        %966 = vmatpush.msra.mxu0 0.0
        %967 = vmatpush.msra.mxu0 0.0
        %968 = vmatpush.msra.mxu0 0.0
        %969 = vmatpush.msra.mxu0 0.0
        %970 = vmatpush.msra.mxu0 0.0
        %971 = vmatpush.msra.mxu0 %v951
        %972 = vmatpush.msra.mxu0 %v949
        %973 = vmatmul.f32.gmra.mxu0 %v955
        %v974 = vpop.f32.mrf.mxu0
        %v975 = vadd.f32 0.0, %v974
        %976 = vdwg.mxu0
        %977 = vrot.lane.b32.xlu0 %v519, 96
        %v978 = vpop.permute.xlu0 %977
        %979 = vrot.lane.b32.xlu0 %v521, 96
        %v980 = vpop.permute.xlu0 %979
        %v984 = vsel %vm755, %v857, 0
        %986 = vmatpush.msra.mxu0 0.0
        %987 = vmatpush.msra.mxu0 0.0
        %988 = vmatpush.msra.mxu0 0.0
        %989 = vmatpush.msra.mxu0 0.0
        %990 = vmatpush.msra.mxu0 0.0
        %991 = vmatpush.msra.mxu0 0.0
        %992 = vmatpush.msra.mxu0 0.0
        %993 = vmatpush.msra.mxu0 0.0
        %994 = vmatpush.msra.mxu0 0.0
        %995 = vmatpush.msra.mxu0 0.0
        %996 = vmatpush.msra.mxu0 0.0
        %997 = vmatpush.msra.mxu0 0.0
        %998 = vmatpush.msra.mxu0 0.0
        %999 = vmatpush.msra.mxu0 0.0
        %1000 = vmatpush.msra.mxu0 %v980
        %1001 = vmatpush.msra.mxu0 %v978
        %1002 = vmatmul.f32.gmra.mxu0 %v984
        %v1003 = vpop.f32.mrf.mxu0
        %v1004 = vadd.f32 0.0, %v1003
        %1005 = vdwg.mxu0
        %1006 = vrot.lane.b32.xlu0 %v523, 96
        %v1007 = vpop.permute.xlu0 %1006
        %1008 = vrot.lane.b32.xlu0 %v525, 96
        %v1009 = vpop.permute.xlu0 %1008
        %v1013 = vsel %vm755, %v872, 0
        %1015 = vmatpush.msra.mxu0 0.0
        %1016 = vmatpush.msra.mxu0 0.0
        %1017 = vmatpush.msra.mxu0 0.0
        %1018 = vmatpush.msra.mxu0 0.0
        %1019 = vmatpush.msra.mxu0 0.0
        %1020 = vmatpush.msra.mxu0 0.0
        %1021 = vmatpush.msra.mxu0 0.0
        %1022 = vmatpush.msra.mxu0 0.0
        %1023 = vmatpush.msra.mxu0 0.0
        %1024 = vmatpush.msra.mxu0 0.0
        %1025 = vmatpush.msra.mxu0 0.0
        %1026 = vmatpush.msra.mxu0 0.0
        %1027 = vmatpush.msra.mxu0 0.0
        %1028 = vmatpush.msra.mxu0 0.0
        %1029 = vmatpush.msra.mxu0 %v1009
        %1030 = vmatpush.msra.mxu0 %v1007
        %1031 = vmatmul.f32.gmra.mxu0 %v1013
        %v1032 = vpop.f32.mrf.mxu0
        %v1033 = vadd.f32 0.0, %v1032
        %1034 = vdwg.mxu0
        %1035 = vrot.lane.b32.xlu0 %v527, 96
        %v1036 = vpop.permute.xlu0 %1035
        %1037 = vrot.lane.b32.xlu0 %v529, 96
        %v1038 = vpop.permute.xlu0 %1037
        %v1042 = vsel %vm755, %v887, 0
        %1044 = vmatpush.msra.mxu0 0.0
        %1045 = vmatpush.msra.mxu0 0.0
        %1046 = vmatpush.msra.mxu0 0.0
        %1047 = vmatpush.msra.mxu0 0.0
        %1048 = vmatpush.msra.mxu0 0.0
        %1049 = vmatpush.msra.mxu0 0.0
        %1050 = vmatpush.msra.mxu0 0.0
        %1051 = vmatpush.msra.mxu0 0.0
        %1052 = vmatpush.msra.mxu0 0.0
        %1053 = vmatpush.msra.mxu0 0.0
        %1054 = vmatpush.msra.mxu0 0.0
        %1055 = vmatpush.msra.mxu0 0.0
        %1056 = vmatpush.msra.mxu0 0.0
        %1057 = vmatpush.msra.mxu0 0.0
        %1058 = vmatpush.msra.mxu0 %v1038
        %1059 = vmatpush.msra.mxu0 %v1036
        %1060 = vmatmul.f32.gmra.mxu0 %v1042
        %v1061 = vpop.f32.mrf.mxu0
        %v1062 = vadd.f32 0.0, %v1061
        %1063 = vdwg.mxu0
        %1064 = vrot.lane.b32.xlu0 %v531, 96
        %v1065 = vpop.permute.xlu0 %1064
        %1066 = vrot.lane.b32.xlu0 %v533, 96
        %v1067 = vpop.permute.xlu0 %1066
        %v1071 = vsel %vm755, %v902, 0
        %1073 = vmatpush.msra.mxu0 0.0
        %1074 = vmatpush.msra.mxu0 0.0
        %1075 = vmatpush.msra.mxu0 0.0
        %1076 = vmatpush.msra.mxu0 0.0
        %1077 = vmatpush.msra.mxu0 0.0
        %1078 = vmatpush.msra.mxu0 0.0
        %1079 = vmatpush.msra.mxu0 0.0
        %1080 = vmatpush.msra.mxu0 0.0
        %1081 = vmatpush.msra.mxu0 0.0
        %1082 = vmatpush.msra.mxu0 0.0
        %1083 = vmatpush.msra.mxu0 0.0
        %1084 = vmatpush.msra.mxu0 0.0
        %1085 = vmatpush.msra.mxu0 0.0
        %1086 = vmatpush.msra.mxu0 0.0
        %1087 = vmatpush.msra.mxu0 %v1067
        %1088 = vmatpush.msra.mxu0 %v1065
        %1089 = vmatmul.f32.gmra.mxu0 %v1071
        %v1090 = vpop.f32.mrf.mxu0
        %v1091 = vadd.f32 0.0, %v1090
        %1092 = vdwg.mxu0
        %1093 = vrot.lane.b32.xlu0 %v535, 96
        %v1094 = vpop.permute.xlu0 %1093
        %1095 = vrot.lane.b32.xlu0 %v537, 96
        %v1096 = vpop.permute.xlu0 %1095
        %v1100 = vsel %vm755, %v917, 0
        %1102 = vmatpush.msra.mxu0 0.0
        %1103 = vmatpush.msra.mxu0 0.0
        %1104 = vmatpush.msra.mxu0 0.0
        %1105 = vmatpush.msra.mxu0 0.0
        %1106 = vmatpush.msra.mxu0 0.0
        %1107 = vmatpush.msra.mxu0 0.0
        %1108 = vmatpush.msra.mxu0 0.0
        %1109 = vmatpush.msra.mxu0 0.0
        %1110 = vmatpush.msra.mxu0 0.0
        %1111 = vmatpush.msra.mxu0 0.0
        %1112 = vmatpush.msra.mxu0 0.0
        %1113 = vmatpush.msra.mxu0 0.0
        %1114 = vmatpush.msra.mxu0 0.0
        %1115 = vmatpush.msra.mxu0 0.0
        %1116 = vmatpush.msra.mxu0 %v1096
        %1117 = vmatpush.msra.mxu0 %v1094
        %1118 = vmatmul.f32.gmra.mxu0 %v1100
        %v1119 = vpop.f32.mrf.mxu0
        %v1120 = vadd.f32 0.0, %v1119
        %1121 = vdwg.mxu0
        %1122 = vrot.lane.b32.xlu0 %v539, 96
        %v1123 = vpop.permute.xlu0 %1122
        %1124 = vrot.lane.b32.xlu0 %v541, 96
        %v1125 = vpop.permute.xlu0 %1124
        %v1129 = vsel %vm755, %v932, 0
        %1131 = vmatpush.msra.mxu0 0.0
        %1132 = vmatpush.msra.mxu0 0.0
        %1133 = vmatpush.msra.mxu0 0.0
        %1134 = vmatpush.msra.mxu0 0.0
        %1135 = vmatpush.msra.mxu0 0.0
        %1136 = vmatpush.msra.mxu0 0.0
        %1137 = vmatpush.msra.mxu0 0.0
        %1138 = vmatpush.msra.mxu0 0.0
        %1139 = vmatpush.msra.mxu0 0.0
        %1140 = vmatpush.msra.mxu0 0.0
        %1141 = vmatpush.msra.mxu0 0.0
        %1142 = vmatpush.msra.mxu0 0.0
        %1143 = vmatpush.msra.mxu0 0.0
        %1144 = vmatpush.msra.mxu0 0.0
        %1145 = vmatpush.msra.mxu0 %v1125
        %1146 = vmatpush.msra.mxu0 %v1123
        %1147 = vmatmul.f32.gmra.mxu0 %v1129
        %v1148 = vpop.f32.mrf.mxu0
        %v1149 = vadd.f32 0.0, %v1148
        %1150 = vdwg.mxu0
        %1151 = vrot.lane.b32.xlu0 %v543, 96
        %v1152 = vpop.permute.xlu0 %1151
        %1153 = vrot.lane.b32.xlu0 %v545, 96
        %v1154 = vpop.permute.xlu0 %1153
        %v1158 = vsel %vm755, %v947, 0
        %1160 = vmatpush.msra.mxu0 0.0
        %1161 = vmatpush.msra.mxu0 0.0
        %1162 = vmatpush.msra.mxu0 0.0
        %1163 = vmatpush.msra.mxu0 0.0
        %1164 = vmatpush.msra.mxu0 0.0
        %1165 = vmatpush.msra.mxu0 0.0
        %1166 = vmatpush.msra.mxu0 0.0
        %1167 = vmatpush.msra.mxu0 0.0
        %1168 = vmatpush.msra.mxu0 0.0
        %1169 = vmatpush.msra.mxu0 0.0
        %1170 = vmatpush.msra.mxu0 0.0
        %1171 = vmatpush.msra.mxu0 0.0
        %1172 = vmatpush.msra.mxu0 0.0
        %1173 = vmatpush.msra.mxu0 0.0
        %1174 = vmatpush.msra.mxu0 %v1154
        %1175 = vmatpush.msra.mxu0 %v1152
        %1176 = vmatmul.f32.gmra.mxu0 %v1158
        %v1177 = vpop.f32.mrf.mxu0
        %v1178 = vadd.f32 0.0, %v1177
        %1179 = vdwg.mxu0
        %1181 = vrot.lane.b32.xlu0 %v1004, 4
        %v1182 = vpop.permute.xlu0 %1181
        %1185 = vrot.lane.b32.xlu0 %v1033, 8
        %v1186 = vpop.permute.xlu0 %1185
        %1189 = vrot.lane.b32.xlu0 %v1062, 12
        %v1190 = vpop.permute.xlu0 %1189
        %1193 = vrot.lane.b32.xlu0 %v1091, 16
        %v1194 = vpop.permute.xlu0 %1193
        %1197 = vrot.lane.b32.xlu0 %v1120, 20
        %v1198 = vpop.permute.xlu0 %1197
        %1201 = vrot.lane.b32.xlu0 %v1149, 24
        %v1202 = vpop.permute.xlu0 %1201
        %1205 = vrot.lane.b32.xlu0 %v1178, 28
        %v1206 = vpop.permute.xlu0 %1205
        %v1208 = vsel %vm546, %v975, %v1182
        %vm1209 = vcmask 64512
        %v1210 = vsel %vm1209, %v1208, %v1186
        %vm1211 = vcmask 97280
        %v1212 = vsel %vm1211, %v1210, %v1190
        %v1213 = vsel %vm755, %v1212, %v1194
        %vm1214 = vcmask 162816
        %v1215 = vsel %vm1214, %v1213, %v1198
        %vm1216 = vcmask 195584
        %v1217 = vsel %vm1216, %v1215, %v1202
        %vm1218 = vcmask 228352
        %v1219 = vsel %vm1218, %v1217, %v1206
        %v1220 = vld [vmem:[#allocation11] sm:$0xff]
        %v1221 = vld [vmem:[#allocation11 + $0x8] sm:$0xff]
        %v1222 = vld [vmem:[#allocation11 + $0x10] sm:$0xff]
        %v1223 = vld [vmem:[#allocation11 + $0x18] sm:$0xff]
        %v1224 = vld [vmem:[%s7] sm:$0x1]
        %v1226 = vperm.slane %v1224, 0
        %v1229 = vsel %vm440, %v1219, 0
        %1231 = vmatpush.msra.mxu0 0.0
        %1232 = vmatpush.msra.mxu0 0.0
        %1233 = vmatpush.msra.mxu0 0.0
        %1234 = vmatpush.msra.mxu0 0.0
        %1235 = vmatpush.msra.mxu0 0.0
        %1236 = vmatpush.msra.mxu0 0.0
        %1237 = vmatpush.msra.mxu0 0.0
        %1238 = vmatpush.msra.mxu0 0.0
        %1239 = vmatpush.msra.mxu0 0.0
        %1240 = vmatpush.msra.mxu0 0.0
        %1241 = vmatpush.msra.mxu0 0.0
        %1242 = vmatpush.msra.mxu0 0.0
        %1243 = vmatpush.msra.mxu0 %v1223
        %1244 = vmatpush.msra.mxu0 %v1222
        %1245 = vmatpush.msra.mxu0 %v1221
        %1246 = vmatpush.msra.mxu0 %v1220
        %1247 = vmatmul.f32.gmra.mxu0 %v1229
        %v1248 = vpop.f32.mrf.mxu0
        %v1249 = vadd.f32 %v1226, %v1248
        %1250 = vdwg.mxu0
        %1251 = vst.msk [vmem:[%s428] sm:$0xff] %vm440, %v1249
        %s1252 = sand.u32 %s216, 1
        %s1253 = scalar_lea.sflag [#allocation4], %s1252
        %s1254 = sand.u32 %s216, 1
        %s1255 = smul.addr %s1254, 8
        %s1256 = scalar_lea.vmem [#allocation13], %s1255
        // Predicated region
        $region77: #{cross_attention_forward.1} parent=51 // pred_check
          %p1257 = pneg %p226
        $region78: #{cross_attention_forward.1} parent=51 // pred_check_branch
          %1259 = sbr.rel (%p1257) target = $region80
        $region79: #{cross_attention_forward.1} parent=51 // pred_region
          %1261 = vsyncadd %s1253, 0
          %s1262 = smul.addr %s30, 8
          %s1263 = scalar_lea.hbm %s8, %s1262
          %s1265 = sshll.u32 %s1256, 4
          %s1266 = int_to_ptr.vmem [resolvable:$true] %s1265
          %s1267 = sshll.u32 %s1263, 4
          %s1268 = int_to_ptr.hbm [resolvable:$true] %s1267
          %1270 = dma.vmem_to_hbm [thread:$0]  %s1266, 128, %s1268, %s1253
        $region80: #{cross_attention_forward.1} parent=51 // pred_fallthru
          _
      $region52: #{cross_attention_forward.1} parent=5 // pred_fallthru
        _
      %p1271 = scmp.le.s32.totalorder 2, %s25
      // Predicated region
      $region81: #{cross_attention_forward.1} parent=5 // pred_check
        %p1272 = pneg %p1271
      $region82: #{cross_attention_forward.1} parent=5 // pred_check_branch
        %1274 = sbr.rel (%p1272) target = $region84
      $region83: #{cross_attention_forward.1} parent=5 // pred_region
        %s1275 = ssub.s32 %s25, 2
        // Predicated region
        $region85: #{cross_attention_forward.1} parent=83 // pred_check
          %p1276 = pneg %p232
        $region86: #{cross_attention_forward.1} parent=83 // pred_check_branch
          %1278 = sbr.rel (%p1276) target = $region88
        $region87: #{cross_attention_forward.1} parent=83 // pred_region
          %s1279 = sand.u32 %s217, 1
          %s1280 = scalar_lea.sflag [#allocation4], %s1279
          %s1281 = sand.u32 %s217, 1
          %s1282 = smul.addr %s1281, 8
          %s1283 = scalar_lea.vmem [#allocation13], %s1282
          %1285 = dma.done %s1280, 128
        $region88: #{cross_attention_forward.1} parent=83 // pred_fallthru
          _
      $region84: #{cross_attention_forward.1} parent=5 // pred_fallthru
        _
    $region6: #{cross_attention_forward.1} parent=1 // loop_footer
      %s29 = sadd.s32 1, %s25
    $region7: #{cross_attention_forward.1} parent=1 // loop_footer_branch
      %24 = sbr.rel target = $region3
    $region8: #{cross_attention_forward.1} parent=1 // loop_exit
      _
    %1286 = vsyncpa [#allocation3], 1
    %s1287 = scalar_lea.sflag [#allocation3], 1
    %1288 = vsyncpa %s1287, 1
    %1289 = vsyncpa [#allocation6], 1
    %s1290 = scalar_lea.sflag [#allocation6], 1
    %1291 = vsyncpa %s1290, 1
    %1292 = vsyncpa [#allocation9], 1
    %1293 = vsyncpa [#allocation12], 1
    %1294 = vsyncpa [#allocation4], 1
    %s1295 = scalar_lea.sflag [#allocation4], 1
    %1296 = vsyncpa %s1295, 1

</llo_original>
